<compile_context>
chip_gen: v6e
topology: v6e:2x2x1
jax: 0.10.0
libtpu: 0.0.40
codegen_flags: <defaults>
</compile_context>

<pallas_src>
import functools

import jax
import jax.numpy as jnp
from jax.experimental import pallas as pl
from jax.experimental.pallas import tpu as pltpu


def _round_up(n, m):
    return ((n + m - 1) // m) * m


# ----------------------------- Pallas kernel --------------------------------
def _make_rnn_kernel(num_layers: int, seq_len: int):
    """Single-invocation kernel.

    Ref order:
      x (T, Bp, Dp),
      [W_fused_l (D_l + H, H), b_l (1, H)] * num_layers,
      fc_w (H, Op), fc_b (1, Op),
      out (Bp, Op)
    """

    def kernel(*refs):
        x_ref = refs[0]                              # (T, Bp, Dp)
        w_refs = refs[1:1 + 2 * num_layers]
        fc_w_ref = refs[1 + 2 * num_layers]          # (H, Op)
        fc_b_ref = refs[2 + 2 * num_layers]          # (1, Op)
        out_ref = refs[3 + 2 * num_layers]           # (Bp, Op)

        # Hoist every parameter load out of the time loop (loaded once).
        ws = [w_refs[2 * l][...] for l in range(num_layers)]
        bs = [w_refs[2 * l + 1][...] for l in range(num_layers)]
        fc_w = fc_w_ref[...]
        fc_b = fc_b_ref[...]

        bp = x_ref.shape[1]
        h_dim = ws[0].shape[1]

        def step(t, hs):
            inp = x_ref[t]                           # (Bp, Dp) one timestep
            new_hs = []
            for l in range(num_layers):
                # Fused: [x_t | h_{t-1}] @ [W_ih^T ; W_hh^T] + (b_ih + b_hh)
                z = jnp.concatenate([inp, hs[l]], axis=-1)
                pre = jnp.dot(z, ws[l],
                              preferred_element_type=jnp.float32) + bs[l]
                h_new = jnp.tanh(pre)
                # nn.RNN inter-layer dropout(0.2) is training-only -> identity.
                new_hs.append(h_new)
                inp = h_new
            return tuple(new_hs)

        h0 = tuple(jnp.zeros((bp, h_dim), jnp.float32)
                   for _ in range(num_layers))
        # T is small & static -> fully unrolled in-kernel time loop.
        hs = jax.lax.fori_loop(0, seq_len, step, h0, unroll=True)

        # fc on the last timestep of the last layer (lane-dense padded output).
        y = jnp.dot(hs[-1], fc_w, preferred_element_type=jnp.float32) + fc_b
        out_ref[...] = y.astype(out_ref.dtype)

    return kernel


# ------------------------------ wrapper --------------------------------------
@functools.partial(jax.jit, static_argnames=("num_layers",))
def rnn_regressor_forward(x_btd, flat_weights, fc_w, fc_b, *, num_layers):
    """x_btd: (B, T, D_in) float32, PyTorch batch_first layout.

    flat_weights: per layer [W_ih^T (d_in,H), W_hh^T (H,H), b_ih (1,H), b_hh (1,H)]
    fc_w: (H, O) (= torch fc.weight.T), fc_b: (1, O)
    """
    B, T, D = x_btd.shape
    H, O = fc_w.shape

    Bp = _round_up(B, 8)      # sublane multiple
    Dp = _round_up(D, 128)    # lane multiple for the layer-0 contraction chunk
    Op = _round_up(O, 128)    # lane-dense output -> unmasked stores

    # Time-major + zero-pad batch/feature dims (one fused XLA copy; at
    # production scale emit x time-major upstream and fold the pad away).
    x_p = jnp.pad(jnp.transpose(x_btd, (1, 0, 2)),
                  ((0, 0), (0, Bp - B), (0, Dp - D)))

    # Pre-fuse per-layer weights/biases in the wrapper.
    params = []
    for l in range(num_layers):
        wih, whh, bih, bhh = flat_weights[4 * l: 4 * l + 4]
        d_in = wih.shape[0]
        d_in_p = Dp if l == 0 else H
        w_fused = jnp.concatenate(
            [jnp.pad(wih, ((0, d_in_p - d_in), (0, 0))), whh], axis=0)
        params += [w_fused, bih + bhh]

    fc_w_p = jnp.pad(fc_w, ((0, 0), (0, Op - O)))
    fc_b_p = jnp.pad(fc_b, ((0, 0), (0, Op - O)))

    args = [x_p] + params + [fc_w_p, fc_b_p]
    vmem = pl.BlockSpec(memory_space=pltpu.MemorySpace.VMEM)

    out_p = pl.pallas_call(
        _make_rnn_kernel(num_layers, T),
        out_shape=jax.ShapeDtypeStruct((Bp, Op), jnp.float32),
        in_specs=[vmem] * len(args),
        out_specs=vmem,
    )(*args)

    return out_p[:B, :O]


# -------------------------- pure-JAX reference -------------------------------
def rnn_regressor_ref(x_btd, flat_weights, fc_w, fc_b, num_layers):
    B, T, _ = x_btd.shape
    H = fc_w.shape[0]
    seq = x_btd
    for l in range(num_layers):
        wih, whh, bih, bhh = flat_weights[4 * l: 4 * l + 4]
        h = jnp.zeros((B, H), jnp.float32)
        outs = []
        for t in range(T):
            h = jnp.tanh(seq[:, t, :] @ wih + h @ whh + bih + bhh)
            outs.append(h)
        seq = jnp.stack(outs, axis=1)
    return seq[:, -1, :] @ fc_w + fc_b


# ------------------------------- main -----------------------------------------
if __name__ == "__main__":
    B, T = 2, 8                 # batch, sequence length
    INPUT_DIM = 16
    HIDDEN_DIM = 32
    OUTPUT_DIM = 4
    NUM_LAYERS = 3

    key = jax.random.PRNGKey(0)

    # Deterministic parameter init, PyTorch-style U(-1/sqrt(H), 1/sqrt(H)).
    bound = 1.0 / jnp.sqrt(HIDDEN_DIM)

    def uni(k, shape):
        return jax.random.uniform(k, shape, jnp.float32, -bound, bound)

    flat_weights = []
    for l in range(NUM_LAYERS):
        d_in = INPUT_DIM if l == 0 else HIDDEN_DIM
        key, k1, k2, k3, k4 = jax.random.split(key, 5)
        flat_weights += [
            uni(k1, (d_in, HIDDEN_DIM)),          # W_ih^T  (in, H)
            uni(k2, (HIDDEN_DIM, HIDDEN_DIM)),    # W_hh^T  (H, H)
            uni(k3, (1, HIDDEN_DIM)),             # b_ih
            uni(k4, (1, HIDDEN_DIM)),             # b_hh
        ]
    key, k1, k2, kx = jax.random.split(key, 4)
    fc_bound = 1.0 / jnp.sqrt(HIDDEN_DIM)
    fc_w = jax.random.uniform(k1, (HIDDEN_DIM, OUTPUT_DIM), jnp.float32,
                              -fc_bound, fc_bound)
    fc_b = jax.random.uniform(k2, (1, OUTPUT_DIM), jnp.float32,
                              -fc_bound, fc_bound)

    x = jax.random.normal(kx, (B, T, INPUT_DIM), jnp.float32)

    out = rnn_regressor_forward(x, tuple(flat_weights), fc_w, fc_b,
                                num_layers=NUM_LAYERS)
    out = jax.block_until_ready(out)

    ref = rnn_regressor_ref(x, flat_weights, fc_w, fc_b, NUM_LAYERS)
    assert out.shape == (B, OUTPUT_DIM), out.shape
    assert jnp.allclose(out, ref, atol=2e-5, rtol=2e-5), (out, ref)

    print("KERNEL_OK")
</pallas_src>

<mosaic_0001>
module attributes {stable_mosaic.version = 11 : i64} {
  func.func @kernel(%arg0: memref<8x8x128xf32, #tpu.memory_space<vmem>>, %arg1: memref<160x32xf32, #tpu.memory_space<vmem>>, %arg2: memref<1x32xf32, #tpu.memory_space<vmem>>, %arg3: memref<64x32xf32, #tpu.memory_space<vmem>>, %arg4: memref<1x32xf32, #tpu.memory_space<vmem>>, %arg5: memref<64x32xf32, #tpu.memory_space<vmem>>, %arg6: memref<1x32xf32, #tpu.memory_space<vmem>>, %arg7: memref<32x128xf32, #tpu.memory_space<vmem>>, %arg8: memref<1x128xf32, #tpu.memory_space<vmem>>, %arg9: memref<8x128xf32, #tpu.memory_space<vmem>>) attributes {dimension_semantics = [], scalar_prefetch = 0 : i64, scratch_operands = 0 : i64, tpu.core_type = #tpu.core_type<tc>} {
    %c0 = arith.constant 0 : index
    %c0_0 = arith.constant 0 : index
    %0 = vector.load %arg1[%c0, %c0_0] : memref<160x32xf32, #tpu.memory_space<vmem>>, vector<160x32xf32>
    %c0_1 = arith.constant 0 : index
    %c0_2 = arith.constant 0 : index
    %1 = vector.load %arg3[%c0_1, %c0_2] : memref<64x32xf32, #tpu.memory_space<vmem>>, vector<64x32xf32>
    %c0_3 = arith.constant 0 : index
    %c0_4 = arith.constant 0 : index
    %2 = vector.load %arg5[%c0_3, %c0_4] : memref<64x32xf32, #tpu.memory_space<vmem>>, vector<64x32xf32>
    %c0_5 = arith.constant 0 : index
    %c0_6 = arith.constant 0 : index
    %3 = vector.load %arg2[%c0_5, %c0_6] : memref<1x32xf32, #tpu.memory_space<vmem>>, vector<1x32xf32>
    %c0_7 = arith.constant 0 : index
    %c0_8 = arith.constant 0 : index
    %4 = vector.load %arg4[%c0_7, %c0_8] : memref<1x32xf32, #tpu.memory_space<vmem>>, vector<1x32xf32>
    %c0_9 = arith.constant 0 : index
    %c0_10 = arith.constant 0 : index
    %5 = vector.load %arg6[%c0_9, %c0_10] : memref<1x32xf32, #tpu.memory_space<vmem>>, vector<1x32xf32>
    %c0_11 = arith.constant 0 : index
    %c0_12 = arith.constant 0 : index
    %6 = vector.load %arg7[%c0_11, %c0_12] : memref<32x128xf32, #tpu.memory_space<vmem>>, vector<32x128xf32>
    %c0_13 = arith.constant 0 : index
    %c0_14 = arith.constant 0 : index
    %7 = vector.load %arg8[%c0_13, %c0_14] : memref<1x128xf32, #tpu.memory_space<vmem>>, vector<1x128xf32>
    %cst = arith.constant 0.000000e+00 : f32
    %8 = vector.broadcast %cst : f32 to vector<8x32xf32>
    %cst_15 = arith.constant 0.000000e+00 : f32
    %9 = vector.broadcast %cst_15 : f32 to vector<8x32xf32>
    %cst_16 = arith.constant 0.000000e+00 : f32
    %10 = vector.broadcast %cst_16 : f32 to vector<8x32xf32>
    %c0_i32 = arith.constant 0 : i32
    %11 = arith.index_cast %c0_i32 : i32 to index
    %c0_17 = arith.constant 0 : index
    %c0_18 = arith.constant 0 : index
    %12 = vector.load %arg0[%11, %c0_17, %c0_18] : memref<8x8x128xf32, #tpu.memory_space<vmem>>, vector<1x8x128xf32>
    %13 = vector.shape_cast %12 : vector<1x8x128xf32> to vector<8x128xf32>
    %14 = tpu.concatenate %13, %8 in 1 : vector<8x128xf32>, vector<8x32xf32> -> vector<8x160xf32>
    %cst_19 = arith.constant dense<0.000000e+00> : vector<8x32xf32>
    %15 = tpu.matmul %14, %0, %cst_19 {dimension_numbers = #tpu.dot_dimension_numbers<[1], [0], [0], [1], [0, 0, 1, 1], [], []>} : vector<8x160xf32>, vector<160x32xf32>, vector<8x32xf32> -> vector<8x32xf32>
    %16 = vector.broadcast %3 : vector<1x32xf32> to vector<8x32xf32>
    %17 = arith.addf %15, %16 : vector<8x32xf32>
    %18 = math.tanh %17 : vector<8x32xf32>
    %19 = tpu.concatenate %18, %9 in 1 : vector<8x32xf32>, vector<8x32xf32> -> vector<8x64xf32>
    %cst_20 = arith.constant dense<0.000000e+00> : vector<8x32xf32>
    %20 = tpu.matmul %19, %1, %cst_20 {dimension_numbers = #tpu.dot_dimension_numbers<[1], [0], [0], [1], [0, 0, 1, 1], [], []>} : vector<8x64xf32>, vector<64x32xf32>, vector<8x32xf32> -> vector<8x32xf32>
    %21 = vector.broadcast %4 : vector<1x32xf32> to vector<8x32xf32>
    %22 = arith.addf %20, %21 : vector<8x32xf32>
    %23 = math.tanh %22 : vector<8x32xf32>
    %24 = tpu.concatenate %23, %10 in 1 : vector<8x32xf32>, vector<8x32xf32> -> vector<8x64xf32>
    %cst_21 = arith.constant dense<0.000000e+00> : vector<8x32xf32>
    %25 = tpu.matmul %24, %2, %cst_21 {dimension_numbers = #tpu.dot_dimension_numbers<[1], [0], [0], [1], [0, 0, 1, 1], [], []>} : vector<8x64xf32>, vector<64x32xf32>, vector<8x32xf32> -> vector<8x32xf32>
    %26 = vector.broadcast %5 : vector<1x32xf32> to vector<8x32xf32>
    %27 = arith.addf %25, %26 : vector<8x32xf32>
    %28 = math.tanh %27 : vector<8x32xf32>
    %c1_i32 = arith.constant 1 : i32
    %29 = arith.index_cast %c1_i32 : i32 to index
    %c0_22 = arith.constant 0 : index
    %c0_23 = arith.constant 0 : index
    %30 = vector.load %arg0[%29, %c0_22, %c0_23] : memref<8x8x128xf32, #tpu.memory_space<vmem>>, vector<1x8x128xf32>
    %31 = vector.shape_cast %30 : vector<1x8x128xf32> to vector<8x128xf32>
    %32 = tpu.concatenate %31, %18 in 1 : vector<8x128xf32>, vector<8x32xf32> -> vector<8x160xf32>
    %cst_24 = arith.constant dense<0.000000e+00> : vector<8x32xf32>
    %33 = tpu.matmul %32, %0, %cst_24 {dimension_numbers = #tpu.dot_dimension_numbers<[1], [0], [0], [1], [0, 0, 1, 1], [], []>} : vector<8x160xf32>, vector<160x32xf32>, vector<8x32xf32> -> vector<8x32xf32>
    %34 = vector.broadcast %3 : vector<1x32xf32> to vector<8x32xf32>
    %35 = arith.addf %33, %34 : vector<8x32xf32>
    %36 = math.tanh %35 : vector<8x32xf32>
    %37 = tpu.concatenate %36, %23 in 1 : vector<8x32xf32>, vector<8x32xf32> -> vector<8x64xf32>
    %cst_25 = arith.constant dense<0.000000e+00> : vector<8x32xf32>
    %38 = tpu.matmul %37, %1, %cst_25 {dimension_numbers = #tpu.dot_dimension_numbers<[1], [0], [0], [1], [0, 0, 1, 1], [], []>} : vector<8x64xf32>, vector<64x32xf32>, vector<8x32xf32> -> vector<8x32xf32>
    %39 = vector.broadcast %4 : vector<1x32xf32> to vector<8x32xf32>
    %40 = arith.addf %38, %39 : vector<8x32xf32>
    %41 = math.tanh %40 : vector<8x32xf32>
    %42 = tpu.concatenate %41, %28 in 1 : vector<8x32xf32>, vector<8x32xf32> -> vector<8x64xf32>
    %cst_26 = arith.constant dense<0.000000e+00> : vector<8x32xf32>
    %43 = tpu.matmul %42, %2, %cst_26 {dimension_numbers = #tpu.dot_dimension_numbers<[1], [0], [0], [1], [0, 0, 1, 1], [], []>} : vector<8x64xf32>, vector<64x32xf32>, vector<8x32xf32> -> vector<8x32xf32>
    %44 = vector.broadcast %5 : vector<1x32xf32> to vector<8x32xf32>
    %45 = arith.addf %43, %44 : vector<8x32xf32>
    %46 = math.tanh %45 : vector<8x32xf32>
    %c2_i32 = arith.constant 2 : i32
    %47 = arith.index_cast %c2_i32 : i32 to index
    %c0_27 = arith.constant 0 : index
    %c0_28 = arith.constant 0 : index
    %48 = vector.load %arg0[%47, %c0_27, %c0_28] : memref<8x8x128xf32, #tpu.memory_space<vmem>>, vector<1x8x128xf32>
    %49 = vector.shape_cast %48 : vector<1x8x128xf32> to vector<8x128xf32>
    %50 = tpu.concatenate %49, %36 in 1 : vector<8x128xf32>, vector<8x32xf32> -> vector<8x160xf32>
    %cst_29 = arith.constant dense<0.000000e+00> : vector<8x32xf32>
    %51 = tpu.matmul %50, %0, %cst_29 {dimension_numbers = #tpu.dot_dimension_numbers<[1], [0], [0], [1], [0, 0, 1, 1], [], []>} : vector<8x160xf32>, vector<160x32xf32>, vector<8x32xf32> -> vector<8x32xf32>
    %52 = vector.broadcast %3 : vector<1x32xf32> to vector<8x32xf32>
    %53 = arith.addf %51, %52 : vector<8x32xf32>
    %54 = math.tanh %53 : vector<8x32xf32>
    %55 = tpu.concatenate %54, %41 in 1 : vector<8x32xf32>, vector<8x32xf32> -> vector<8x64xf32>
    %cst_30 = arith.constant dense<0.000000e+00> : vector<8x32xf32>
    %56 = tpu.matmul %55, %1, %cst_30 {dimension_numbers = #tpu.dot_dimension_numbers<[1], [0], [0], [1], [0, 0, 1, 1], [], []>} : vector<8x64xf32>, vector<64x32xf32>, vector<8x32xf32> -> vector<8x32xf32>
    %57 = vector.broadcast %4 : vector<1x32xf32> to vector<8x32xf32>
    %58 = arith.addf %56, %57 : vector<8x32xf32>
    %59 = math.tanh %58 : vector<8x32xf32>
    %60 = tpu.concatenate %59, %46 in 1 : vector<8x32xf32>, vector<8x32xf32> -> vector<8x64xf32>
    %cst_31 = arith.constant dense<0.000000e+00> : vector<8x32xf32>
    %61 = tpu.matmul %60, %2, %cst_31 {dimension_numbers = #tpu.dot_dimension_numbers<[1], [0], [0], [1], [0, 0, 1, 1], [], []>} : vector<8x64xf32>, vector<64x32xf32>, vector<8x32xf32> -> vector<8x32xf32>
    %62 = vector.broadcast %5 : vector<1x32xf32> to vector<8x32xf32>
    %63 = arith.addf %61, %62 : vector<8x32xf32>
    %64 = math.tanh %63 : vector<8x32xf32>
    %c3_i32 = arith.constant 3 : i32
    %65 = arith.index_cast %c3_i32 : i32 to index
    %c0_32 = arith.constant 0 : index
    %c0_33 = arith.constant 0 : index
    %66 = vector.load %arg0[%65, %c0_32, %c0_33] : memref<8x8x128xf32, #tpu.memory_space<vmem>>, vector<1x8x128xf32>
    %67 = vector.shape_cast %66 : vector<1x8x128xf32> to vector<8x128xf32>
    %68 = tpu.concatenate %67, %54 in 1 : vector<8x128xf32>, vector<8x32xf32> -> vector<8x160xf32>
    %cst_34 = arith.constant dense<0.000000e+00> : vector<8x32xf32>
    %69 = tpu.matmul %68, %0, %cst_34 {dimension_numbers = #tpu.dot_dimension_numbers<[1], [0], [0], [1], [0, 0, 1, 1], [], []>} : vector<8x160xf32>, vector<160x32xf32>, vector<8x32xf32> -> vector<8x32xf32>
    %70 = vector.broadcast %3 : vector<1x32xf32> to vector<8x32xf32>
    %71 = arith.addf %69, %70 : vector<8x32xf32>
    %72 = math.tanh %71 : vector<8x32xf32>
    %73 = tpu.concatenate %72, %59 in 1 : vector<8x32xf32>, vector<8x32xf32> -> vector<8x64xf32>
    %cst_35 = arith.constant dense<0.000000e+00> : vector<8x32xf32>
    %74 = tpu.matmul %73, %1, %cst_35 {dimension_numbers = #tpu.dot_dimension_numbers<[1], [0], [0], [1], [0, 0, 1, 1], [], []>} : vector<8x64xf32>, vector<64x32xf32>, vector<8x32xf32> -> vector<8x32xf32>
    %75 = vector.broadcast %4 : vector<1x32xf32> to vector<8x32xf32>
    %76 = arith.addf %74, %75 : vector<8x32xf32>
    %77 = math.tanh %76 : vector<8x32xf32>
    %78 = tpu.concatenate %77, %64 in 1 : vector<8x32xf32>, vector<8x32xf32> -> vector<8x64xf32>
    %cst_36 = arith.constant dense<0.000000e+00> : vector<8x32xf32>
    %79 = tpu.matmul %78, %2, %cst_36 {dimension_numbers = #tpu.dot_dimension_numbers<[1], [0], [0], [1], [0, 0, 1, 1], [], []>} : vector<8x64xf32>, vector<64x32xf32>, vector<8x32xf32> -> vector<8x32xf32>
    %80 = vector.broadcast %5 : vector<1x32xf32> to vector<8x32xf32>
    %81 = arith.addf %79, %80 : vector<8x32xf32>
    %82 = math.tanh %81 : vector<8x32xf32>
    %c4_i32 = arith.constant 4 : i32
    %83 = arith.index_cast %c4_i32 : i32 to index
    %c0_37 = arith.constant 0 : index
    %c0_38 = arith.constant 0 : index
    %84 = vector.load %arg0[%83, %c0_37, %c0_38] : memref<8x8x128xf32, #tpu.memory_space<vmem>>, vector<1x8x128xf32>
    %85 = vector.shape_cast %84 : vector<1x8x128xf32> to vector<8x128xf32>
    %86 = tpu.concatenate %85, %72 in 1 : vector<8x128xf32>, vector<8x32xf32> -> vector<8x160xf32>
    %cst_39 = arith.constant dense<0.000000e+00> : vector<8x32xf32>
    %87 = tpu.matmul %86, %0, %cst_39 {dimension_numbers = #tpu.dot_dimension_numbers<[1], [0], [0], [1], [0, 0, 1, 1], [], []>} : vector<8x160xf32>, vector<160x32xf32>, vector<8x32xf32> -> vector<8x32xf32>
    %88 = vector.broadcast %3 : vector<1x32xf32> to vector<8x32xf32>
    %89 = arith.addf %87, %88 : vector<8x32xf32>
    %90 = math.tanh %89 : vector<8x32xf32>
    %91 = tpu.concatenate %90, %77 in 1 : vector<8x32xf32>, vector<8x32xf32> -> vector<8x64xf32>
    %cst_40 = arith.constant dense<0.000000e+00> : vector<8x32xf32>
    %92 = tpu.matmul %91, %1, %cst_40 {dimension_numbers = #tpu.dot_dimension_numbers<[1], [0], [0], [1], [0, 0, 1, 1], [], []>} : vector<8x64xf32>, vector<64x32xf32>, vector<8x32xf32> -> vector<8x32xf32>
    %93 = vector.broadcast %4 : vector<1x32xf32> to vector<8x32xf32>
    %94 = arith.addf %92, %93 : vector<8x32xf32>
    %95 = math.tanh %94 : vector<8x32xf32>
    %96 = tpu.concatenate %95, %82 in 1 : vector<8x32xf32>, vector<8x32xf32> -> vector<8x64xf32>
    %cst_41 = arith.constant dense<0.000000e+00> : vector<8x32xf32>
    %97 = tpu.matmul %96, %2, %cst_41 {dimension_numbers = #tpu.dot_dimension_numbers<[1], [0], [0], [1], [0, 0, 1, 1], [], []>} : vector<8x64xf32>, vector<64x32xf32>, vector<8x32xf32> -> vector<8x32xf32>
    %98 = vector.broadcast %5 : vector<1x32xf32> to vector<8x32xf32>
    %99 = arith.addf %97, %98 : vector<8x32xf32>
    %100 = math.tanh %99 : vector<8x32xf32>
    %c5_i32 = arith.constant 5 : i32
    %101 = arith.index_cast %c5_i32 : i32 to index
    %c0_42 = arith.constant 0 : index
    %c0_43 = arith.constant 0 : index
    %102 = vector.load %arg0[%101, %c0_42, %c0_43] : memref<8x8x128xf32, #tpu.memory_space<vmem>>, vector<1x8x128xf32>
    %103 = vector.shape_cast %102 : vector<1x8x128xf32> to vector<8x128xf32>
    %104 = tpu.concatenate %103, %90 in 1 : vector<8x128xf32>, vector<8x32xf32> -> vector<8x160xf32>
    %cst_44 = arith.constant dense<0.000000e+00> : vector<8x32xf32>
    %105 = tpu.matmul %104, %0, %cst_44 {dimension_numbers = #tpu.dot_dimension_numbers<[1], [0], [0], [1], [0, 0, 1, 1], [], []>} : vector<8x160xf32>, vector<160x32xf32>, vector<8x32xf32> -> vector<8x32xf32>
    %106 = vector.broadcast %3 : vector<1x32xf32> to vector<8x32xf32>
    %107 = arith.addf %105, %106 : vector<8x32xf32>
    %108 = math.tanh %107 : vector<8x32xf32>
    %109 = tpu.concatenate %108, %95 in 1 : vector<8x32xf32>, vector<8x32xf32> -> vector<8x64xf32>
    %cst_45 = arith.constant dense<0.000000e+00> : vector<8x32xf32>
    %110 = tpu.matmul %109, %1, %cst_45 {dimension_numbers = #tpu.dot_dimension_numbers<[1], [0], [0], [1], [0, 0, 1, 1], [], []>} : vector<8x64xf32>, vector<64x32xf32>, vector<8x32xf32> -> vector<8x32xf32>
    %111 = vector.broadcast %4 : vector<1x32xf32> to vector<8x32xf32>
    %112 = arith.addf %110, %111 : vector<8x32xf32>
    %113 = math.tanh %112 : vector<8x32xf32>
    %114 = tpu.concatenate %113, %100 in 1 : vector<8x32xf32>, vector<8x32xf32> -> vector<8x64xf32>
    %cst_46 = arith.constant dense<0.000000e+00> : vector<8x32xf32>
    %115 = tpu.matmul %114, %2, %cst_46 {dimension_numbers = #tpu.dot_dimension_numbers<[1], [0], [0], [1], [0, 0, 1, 1], [], []>} : vector<8x64xf32>, vector<64x32xf32>, vector<8x32xf32> -> vector<8x32xf32>
    %116 = vector.broadcast %5 : vector<1x32xf32> to vector<8x32xf32>
    %117 = arith.addf %115, %116 : vector<8x32xf32>
    %118 = math.tanh %117 : vector<8x32xf32>
    %c6_i32 = arith.constant 6 : i32
    %119 = arith.index_cast %c6_i32 : i32 to index
    %c0_47 = arith.constant 0 : index
    %c0_48 = arith.constant 0 : index
    %120 = vector.load %arg0[%119, %c0_47, %c0_48] : memref<8x8x128xf32, #tpu.memory_space<vmem>>, vector<1x8x128xf32>
    %121 = vector.shape_cast %120 : vector<1x8x128xf32> to vector<8x128xf32>
    %122 = tpu.concatenate %121, %108 in 1 : vector<8x128xf32>, vector<8x32xf32> -> vector<8x160xf32>
    %cst_49 = arith.constant dense<0.000000e+00> : vector<8x32xf32>
    %123 = tpu.matmul %122, %0, %cst_49 {dimension_numbers = #tpu.dot_dimension_numbers<[1], [0], [0], [1], [0, 0, 1, 1], [], []>} : vector<8x160xf32>, vector<160x32xf32>, vector<8x32xf32> -> vector<8x32xf32>
    %124 = vector.broadcast %3 : vector<1x32xf32> to vector<8x32xf32>
    %125 = arith.addf %123, %124 : vector<8x32xf32>
    %126 = math.tanh %125 : vector<8x32xf32>
    %127 = tpu.concatenate %126, %113 in 1 : vector<8x32xf32>, vector<8x32xf32> -> vector<8x64xf32>
    %cst_50 = arith.constant dense<0.000000e+00> : vector<8x32xf32>
    %128 = tpu.matmul %127, %1, %cst_50 {dimension_numbers = #tpu.dot_dimension_numbers<[1], [0], [0], [1], [0, 0, 1, 1], [], []>} : vector<8x64xf32>, vector<64x32xf32>, vector<8x32xf32> -> vector<8x32xf32>
    %129 = vector.broadcast %4 : vector<1x32xf32> to vector<8x32xf32>
    %130 = arith.addf %128, %129 : vector<8x32xf32>
    %131 = math.tanh %130 : vector<8x32xf32>
    %132 = tpu.concatenate %131, %118 in 1 : vector<8x32xf32>, vector<8x32xf32> -> vector<8x64xf32>
    %cst_51 = arith.constant dense<0.000000e+00> : vector<8x32xf32>
    %133 = tpu.matmul %132, %2, %cst_51 {dimension_numbers = #tpu.dot_dimension_numbers<[1], [0], [0], [1], [0, 0, 1, 1], [], []>} : vector<8x64xf32>, vector<64x32xf32>, vector<8x32xf32> -> vector<8x32xf32>
    %134 = vector.broadcast %5 : vector<1x32xf32> to vector<8x32xf32>
    %135 = arith.addf %133, %134 : vector<8x32xf32>
    %136 = math.tanh %135 : vector<8x32xf32>
    %c7_i32 = arith.constant 7 : i32
    %137 = arith.index_cast %c7_i32 : i32 to index
    %c0_52 = arith.constant 0 : index
    %c0_53 = arith.constant 0 : index
    %138 = vector.load %arg0[%137, %c0_52, %c0_53] : memref<8x8x128xf32, #tpu.memory_space<vmem>>, vector<1x8x128xf32>
    %139 = vector.shape_cast %138 : vector<1x8x128xf32> to vector<8x128xf32>
    %140 = tpu.concatenate %139, %126 in 1 : vector<8x128xf32>, vector<8x32xf32> -> vector<8x160xf32>
    %cst_54 = arith.constant dense<0.000000e+00> : vector<8x32xf32>
    %141 = tpu.matmul %140, %0, %cst_54 {dimension_numbers = #tpu.dot_dimension_numbers<[1], [0], [0], [1], [0, 0, 1, 1], [], []>} : vector<8x160xf32>, vector<160x32xf32>, vector<8x32xf32> -> vector<8x32xf32>
    %142 = vector.broadcast %3 : vector<1x32xf32> to vector<8x32xf32>
    %143 = arith.addf %141, %142 : vector<8x32xf32>
    %144 = math.tanh %143 : vector<8x32xf32>
    %145 = tpu.concatenate %144, %131 in 1 : vector<8x32xf32>, vector<8x32xf32> -> vector<8x64xf32>
    %cst_55 = arith.constant dense<0.000000e+00> : vector<8x32xf32>
    %146 = tpu.matmul %145, %1, %cst_55 {dimension_numbers = #tpu.dot_dimension_numbers<[1], [0], [0], [1], [0, 0, 1, 1], [], []>} : vector<8x64xf32>, vector<64x32xf32>, vector<8x32xf32> -> vector<8x32xf32>
    %147 = vector.broadcast %4 : vector<1x32xf32> to vector<8x32xf32>
    %148 = arith.addf %146, %147 : vector<8x32xf32>
    %149 = math.tanh %148 : vector<8x32xf32>
    %150 = tpu.concatenate %149, %136 in 1 : vector<8x32xf32>, vector<8x32xf32> -> vector<8x64xf32>
    %cst_56 = arith.constant dense<0.000000e+00> : vector<8x32xf32>
    %151 = tpu.matmul %150, %2, %cst_56 {dimension_numbers = #tpu.dot_dimension_numbers<[1], [0], [0], [1], [0, 0, 1, 1], [], []>} : vector<8x64xf32>, vector<64x32xf32>, vector<8x32xf32> -> vector<8x32xf32>
    %152 = vector.broadcast %5 : vector<1x32xf32> to vector<8x32xf32>
    %153 = arith.addf %151, %152 : vector<8x32xf32>
    %154 = math.tanh %153 : vector<8x32xf32>
    %c8_i32 = arith.constant 8 : i32
    %cst_57 = arith.constant dense<0.000000e+00> : vector<8x128xf32>
    %155 = tpu.matmul %154, %6, %cst_57 {dimension_numbers = #tpu.dot_dimension_numbers<[1], [0], [0], [1], [0, 0, 1, 1], [], []>} : vector<8x32xf32>, vector<32x128xf32>, vector<8x128xf32> -> vector<8x128xf32>
    %156 = vector.broadcast %7 : vector<1x128xf32> to vector<8x128xf32>
    %157 = arith.addf %155, %156 : vector<8x128xf32>
    %c0_58 = arith.constant 0 : index
    %c0_59 = arith.constant 0 : index
    %158 = vector.load %arg9[%c0_58, %c0_59] : memref<8x128xf32, #tpu.memory_space<vmem>>, vector<8x128xf32>
    tpu.vector_store %arg9[%c0_58, %c0_59], %157 {strides = array<i32>} : memref<8x128xf32, #tpu.memory_space<vmem>>, vector<8x128xf32>,
    return
  }
}

</mosaic_0001>

<llo_original>
// kernel: rnn_regressor_forward.1
$region0: #{rnn_regressor_forward.1}
  #allocation0 [shape = 'u32[]', space=smem, size = 0x4, offset = 0x4, fixed_abs, tag = 'smem constant byte address 0x4 - core index']
  #allocation1 [shape = 'u32[144,128]{1,0:T(1,128)}', space=vmem, size = 0x12000, scoped, tag = 'internal scratch']
  %s0 = inlined_call_operand.vmem [shape: f32[8,8,128], index: 0, kind: input, shape index: {}]
  %s1 = inlined_call_operand.vmem [shape: f32[160,32], index: 1, kind: input, shape index: {}]
  %s2 = inlined_call_operand.vmem [shape: f32[1,32], index: 2, kind: input, shape index: {}]
  %s3 = inlined_call_operand.vmem [shape: f32[64,32], index: 3, kind: input, shape index: {}]
  %s4 = inlined_call_operand.vmem [shape: f32[1,32], index: 4, kind: input, shape index: {}]
  %s5 = inlined_call_operand.vmem [shape: f32[64,32], index: 5, kind: input, shape index: {}]
  %s6 = inlined_call_operand.vmem [shape: f32[1,32], index: 6, kind: input, shape index: {}]
  %s7 = inlined_call_operand.vmem [shape: f32[32,128], index: 7, kind: input, shape index: {}]
  %s8 = inlined_call_operand.vmem [shape: f32[1,128], index: 8, kind: input, shape index: {}]
  %s9 = inlined_call_operand.vmem [shape: f32[8,128], index: 9, kind: output, shape index: {}]
  %s10 = sld [smem:[#allocation0]]
  $region46: #{rnn_regressor_forward.1} parent=0
    _
  %s12 = ssub.s32 1, %s10
  %s13 = scalar_select 0, %s12, %s10
  // Predicated region
  $region2: #{rnn_regressor_forward.1} parent=0 // pred_check
    _
  $region3: #{rnn_regressor_forward.1} parent=0 // pred_check_branch
    %15 = sbr.rel (0) target = $region5
  $region4: #{rnn_regressor_forward.1} parent=0 // pred_region
    _
  $region5: #{rnn_regressor_forward.1} parent=0 // pred_fallthru
    _
  // Predicated region
  $region6: #{rnn_regressor_forward.1} parent=0 // pred_check
    _
  $region7: #{rnn_regressor_forward.1} parent=0 // pred_check_branch
    %17 = sbr.rel (0) target = $region9
  $region8: #{rnn_regressor_forward.1} parent=0 // pred_region
    _
  $region9: #{rnn_regressor_forward.1} parent=0 // pred_fallthru
    _
  // Predicated region
  $region10: #{rnn_regressor_forward.1} parent=0 // pred_check
    _
  $region11: #{rnn_regressor_forward.1} parent=0 // pred_check_branch
    %19 = sbr.rel (0) target = $region13
  $region12: #{rnn_regressor_forward.1} parent=0 // pred_region
    _
  $region13: #{rnn_regressor_forward.1} parent=0 // pred_fallthru
    _
  // Predicated region
  $region14: #{rnn_regressor_forward.1} parent=0 // pred_check
    _
  $region15: #{rnn_regressor_forward.1} parent=0 // pred_check_branch
    %21 = sbr.rel (0) target = $region17
  $region16: #{rnn_regressor_forward.1} parent=0 // pred_region
    _
  $region17: #{rnn_regressor_forward.1} parent=0 // pred_fallthru
    _
  // Predicated region
  $region18: #{rnn_regressor_forward.1} parent=0 // pred_check
    _
  $region19: #{rnn_regressor_forward.1} parent=0 // pred_check_branch
    %23 = sbr.rel (0) target = $region21
  $region20: #{rnn_regressor_forward.1} parent=0 // pred_region
    _
  $region21: #{rnn_regressor_forward.1} parent=0 // pred_fallthru
    _
  // Predicated region
  $region22: #{rnn_regressor_forward.1} parent=0 // pred_check
    _
  $region23: #{rnn_regressor_forward.1} parent=0 // pred_check_branch
    %25 = sbr.rel (0) target = $region25
  $region24: #{rnn_regressor_forward.1} parent=0 // pred_region
    _
  $region25: #{rnn_regressor_forward.1} parent=0 // pred_fallthru
    _
  // Predicated region
  $region26: #{rnn_regressor_forward.1} parent=0 // pred_check
    _
  $region27: #{rnn_regressor_forward.1} parent=0 // pred_check_branch
    %27 = sbr.rel (0) target = $region29
  $region28: #{rnn_regressor_forward.1} parent=0 // pred_region
    _
  $region29: #{rnn_regressor_forward.1} parent=0 // pred_fallthru
    _
  // Predicated region
  $region30: #{rnn_regressor_forward.1} parent=0 // pred_check
    _
  $region31: #{rnn_regressor_forward.1} parent=0 // pred_check_branch
    %29 = sbr.rel (0) target = $region33
  $region32: #{rnn_regressor_forward.1} parent=0 // pred_region
    _
  $region33: #{rnn_regressor_forward.1} parent=0 // pred_fallthru
    _
  // Predicated region
  $region34: #{rnn_regressor_forward.1} parent=0 // pred_check
    _
  $region35: #{rnn_regressor_forward.1} parent=0 // pred_check_branch
    %31 = sbr.rel (0) target = $region37
  $region36: #{rnn_regressor_forward.1} parent=0 // pred_region
    _
  $region37: #{rnn_regressor_forward.1} parent=0 // pred_fallthru
    _
  %v32 = vld [vmem:[%s1] sm:$0xff]
  %v33 = vld [vmem:[%s1 + $0x8] sm:$0xff]
  %v34 = vld [vmem:[%s1 + $0x10] sm:$0xff]
  %v35 = vld [vmem:[%s1 + $0x18] sm:$0xff]
  %v36 = vld [vmem:[%s1 + $0x20] sm:$0xff]
  %v37 = vld [vmem:[%s1 + $0x28] sm:$0xff]
  %v38 = vld [vmem:[%s1 + $0x30] sm:$0xff]
  %v39 = vld [vmem:[%s1 + $0x38] sm:$0xff]
  %v40 = vld [vmem:[%s1 + $0x40] sm:$0xff]
  %v41 = vld [vmem:[%s1 + $0x48] sm:$0xff]
  %v42 = vld [vmem:[%s1 + $0x50] sm:$0xff]
  %v43 = vld [vmem:[%s1 + $0x58] sm:$0xff]
  %v44 = vld [vmem:[%s1 + $0x60] sm:$0xff]
  %v45 = vld [vmem:[%s1 + $0x68] sm:$0xff]
  %v46 = vld [vmem:[%s1 + $0x70] sm:$0xff]
  %v47 = vld [vmem:[%s1 + $0x78] sm:$0xff]
  %v48 = vld [vmem:[%s1 + $0x80] sm:$0xff]
  %v49 = vld [vmem:[%s1 + $0x88] sm:$0xff]
  %v50 = vld [vmem:[%s1 + $0x90] sm:$0xff]
  %v51 = vld [vmem:[%s1 + $0x98] sm:$0xff]
  %v52 = vld [vmem:[%s3] sm:$0xff]
  %v53 = vld [vmem:[%s3 + $0x8] sm:$0xff]
  %v54 = vld [vmem:[%s3 + $0x10] sm:$0xff]
  %v55 = vld [vmem:[%s3 + $0x18] sm:$0xff]
  %v56 = vld [vmem:[%s3 + $0x20] sm:$0xff]
  %v57 = vld [vmem:[%s3 + $0x28] sm:$0xff]
  %v58 = vld [vmem:[%s3 + $0x30] sm:$0xff]
  %v59 = vld [vmem:[%s3 + $0x38] sm:$0xff]
  %v60 = vld [vmem:[%s5] sm:$0xff]
  %v61 = vld [vmem:[%s5 + $0x8] sm:$0xff]
  %v62 = vld [vmem:[%s5 + $0x10] sm:$0xff]
  %v63 = vld [vmem:[%s5 + $0x18] sm:$0xff]
  %v64 = vld [vmem:[%s5 + $0x20] sm:$0xff]
  %v65 = vld [vmem:[%s5 + $0x28] sm:$0xff]
  %v66 = vld [vmem:[%s5 + $0x30] sm:$0xff]
  %v67 = vld [vmem:[%s5 + $0x38] sm:$0xff]
  %v68 = vld [vmem:[%s2] sm:$0x1]
  %v69 = vld [vmem:[%s4] sm:$0x1]
  %v70 = vld [vmem:[%s6] sm:$0x1]
  %v71 = vld [vmem:[%s7] sm:$0xff]
  %v72 = vld [vmem:[%s7 + $0x8] sm:$0xff]
  %v73 = vld [vmem:[%s7 + $0x10] sm:$0xff]
  %v74 = vld [vmem:[%s7 + $0x18] sm:$0xff]
  %v75 = vld [vmem:[%s8] sm:$0x1]
  %v76 = vld [vmem:[%s0] sm:$0xff]
  %v78 = vlaneseq
  %v79 = vshrl.u32 %v78, 7
  %v80 = vsub.s32 0, %v79
  %v81 = vrot.slane %v68, %v80
  %vm83 = vcmask 261120
  %v85 = vsel %vm83, 0.0, 0
  %87 = vmatprep.subr.mxu0 0.0
  %88 = vmatpush1.msra.mxu0 %v47
  %89 = vmatprep.subr.mxu0 0.0
  %90 = vmatpush1.msra.mxu0 %v46
  %91 = vmatprep.subr.mxu0 0.0
  %92 = vmatpush1.msra.mxu0 %v45
  %93 = vmatprep.subr.mxu0 0.0
  %94 = vmatpush1.msra.mxu0 %v44
  %95 = vmatprep.subr.mxu0 0.0
  %96 = vmatpush1.msra.mxu0 %v43
  %97 = vmatprep.subr.mxu0 0.0
  %98 = vmatpush1.msra.mxu0 %v42
  %99 = vmatprep.subr.mxu0 0.0
  %100 = vmatpush1.msra.mxu0 %v41
  %101 = vmatprep.subr.mxu0 0.0
  %102 = vmatpush1.msra.mxu0 %v40
  %103 = vmatprep.subr.mxu0 0.0
  %104 = vmatpush1.msra.mxu0 %v39
  %105 = vmatprep.subr.mxu0 0.0
  %106 = vmatpush1.msra.mxu0 %v38
  %107 = vmatprep.subr.mxu0 0.0
  %108 = vmatpush1.msra.mxu0 %v37
  %109 = vmatprep.subr.mxu0 0.0
  %110 = vmatpush1.msra.mxu0 %v36
  %111 = vmatprep.subr.mxu0 0.0
  %112 = vmatpush1.msra.mxu0 %v35
  %113 = vmatprep.subr.mxu0 0.0
  %114 = vmatpush1.msra.mxu0 %v34
  %115 = vmatprep.subr.mxu0 0.0
  %116 = vmatpush1.msra.mxu0 %v33
  %117 = vmatprep.subr.mxu0 0.0
  %118 = vmatpush1.msra.mxu0 %v32
  %119 = vmatprep.subr.mxu0 0.0
  %120 = vmatpush2.msra.mxu0 0.0
  %121 = vmatprep.subr.mxu0 0.0
  %122 = vmatpush2.msra.mxu0 0.0
  %123 = vmatprep.subr.mxu0 0.0
  %124 = vmatpush2.msra.mxu0 0.0
  %125 = vmatprep.subr.mxu0 0.0
  %126 = vmatpush2.msra.mxu0 0.0
  %127 = vmatprep.subr.mxu0 0.0
  %128 = vmatpush2.msra.mxu0 0.0
  %129 = vmatprep.subr.mxu0 0.0
  %130 = vmatpush2.msra.mxu0 0.0
  %131 = vmatprep.subr.mxu0 0.0
  %132 = vmatpush2.msra.mxu0 0.0
  %133 = vmatprep.subr.mxu0 0.0
  %134 = vmatpush2.msra.mxu0 0.0
  %135 = vmatprep.subr.mxu0 0.0
  %136 = vmatpush2.msra.mxu0 0.0
  %137 = vmatprep.subr.mxu0 0.0
  %138 = vmatpush2.msra.mxu0 0.0
  %139 = vmatprep.subr.mxu0 0.0
  %140 = vmatpush2.msra.mxu0 0.0
  %141 = vmatprep.subr.mxu0 0.0
  %142 = vmatpush2.msra.mxu0 0.0
  %143 = vmatprep.subr.mxu0 0.0
  %144 = vmatpush2.msra.mxu0 %v51
  %145 = vmatprep.subr.mxu0 0.0
  %146 = vmatpush2.msra.mxu0 %v50
  %147 = vmatprep.subr.mxu0 0.0
  %148 = vmatpush2.msra.mxu0 %v49
  %149 = vmatprep.subr.mxu0 0.0
  %150 = vmatpush2.msra.mxu0 %v48
  %151 = vmatprep.mubr.f32.mxu0 %v85
  %152 = vmatmul.mubr.f32.gmra.mxu0 %v76
  %v153 = vpop.f32.mrf.mxu0
  %v154 = vadd.f32 %v81, %v153
  %v155 = vpop.f32.mrf.mxu0
  %156 = vdwg.mxu0
  %v157 = vtanh.pop %v154
  %v158 = vsel %vm83, %v157, 0.0
  %v160 = vlaneseq
  %v161 = vshrl.u32 %v160, 7
  %v162 = vsub.s32 0, %v161
  %v163 = vrot.slane %v69, %v162
  %vm165 = vcmask 523264
  %v167 = vsel %vm165, %v158, 0
  %169 = vmatprep.subr.mxu0 0.0
  %170 = vmatpush1.msra.mxu0 0.0
  %171 = vmatprep.subr.mxu0 0.0
  %172 = vmatpush1.msra.mxu0 0.0
  %173 = vmatprep.subr.mxu0 0.0
  %174 = vmatpush1.msra.mxu0 0.0
  %175 = vmatprep.subr.mxu0 0.0
  %176 = vmatpush1.msra.mxu0 0.0
  %177 = vmatprep.subr.mxu0 0.0
  %178 = vmatpush1.msra.mxu0 0.0
  %179 = vmatprep.subr.mxu0 0.0
  %180 = vmatpush1.msra.mxu0 0.0
  %181 = vmatprep.subr.mxu0 0.0
  %182 = vmatpush1.msra.mxu0 0.0
  %183 = vmatprep.subr.mxu0 0.0
  %184 = vmatpush1.msra.mxu0 0.0
  %185 = vmatprep.subr.mxu0 0.0
  %186 = vmatpush1.msra.mxu0 %v59
  %187 = vmatprep.subr.mxu0 0.0
  %188 = vmatpush1.msra.mxu0 %v58
  %189 = vmatprep.subr.mxu0 0.0
  %190 = vmatpush1.msra.mxu0 %v57
  %191 = vmatprep.subr.mxu0 0.0
  %192 = vmatpush1.msra.mxu0 %v56
  %193 = vmatprep.subr.mxu0 0.0
  %194 = vmatpush1.msra.mxu0 %v55
  %195 = vmatprep.subr.mxu0 0.0
  %196 = vmatpush1.msra.mxu0 %v54
  %197 = vmatprep.subr.mxu0 0.0
  %198 = vmatpush1.msra.mxu0 %v53
  %199 = vmatprep.subr.mxu0 0.0
  %200 = vmatpush1.msra.mxu0 %v52
  %201 = vmatprep.subr.mxu0 0.0
  %202 = vmatpush2.msra.mxu0 0.0
  %203 = vmatprep.subr.mxu0 0.0
  %204 = vmatpush2.msra.mxu0 0.0
  %205 = vmatprep.subr.mxu0 0.0
  %206 = vmatpush2.msra.mxu0 0.0
  %207 = vmatprep.subr.mxu0 0.0
  %208 = vmatpush2.msra.mxu0 0.0
  %209 = vmatprep.subr.mxu0 0.0
  %210 = vmatpush2.msra.mxu0 0.0
  %211 = vmatprep.subr.mxu0 0.0
  %212 = vmatpush2.msra.mxu0 0.0
  %213 = vmatprep.subr.mxu0 0.0
  %214 = vmatpush2.msra.mxu0 0.0
  %215 = vmatprep.subr.mxu0 0.0
  %216 = vmatpush2.msra.mxu0 0.0
  %217 = vmatprep.subr.mxu0 0.0
  %218 = vmatpush2.msra.mxu0 0.0
  %219 = vmatprep.subr.mxu0 0.0
  %220 = vmatpush2.msra.mxu0 0.0
  %221 = vmatprep.subr.mxu0 0.0
  %222 = vmatpush2.msra.mxu0 0.0
  %223 = vmatprep.subr.mxu0 0.0
  %224 = vmatpush2.msra.mxu0 0.0
  %225 = vmatprep.subr.mxu0 0.0
  %226 = vmatpush2.msra.mxu0 0.0
  %227 = vmatprep.subr.mxu0 0.0
  %228 = vmatpush2.msra.mxu0 0.0
  %229 = vmatprep.subr.mxu0 0.0
  %230 = vmatpush2.msra.mxu0 0.0
  %231 = vmatprep.subr.mxu0 0.0
  %232 = vmatpush2.msra.mxu0 0.0
  %233 = vmatprep.mubr.f32.mxu0 0.0
  %234 = vmatmul.mubr.f32.gmra.mxu0 %v167
  %v235 = vpop.f32.mrf.mxu0
  %v236 = vadd.f32 %v163, %v235
  %v237 = vpop.f32.mrf.mxu0
  %238 = vdwg.mxu0
  %v239 = vtanh.pop %v236
  %v240 = vsel %vm83, %v239, 0.0
  %v242 = vlaneseq
  %v243 = vshrl.u32 %v242, 7
  %v244 = vsub.s32 0, %v243
  %v245 = vrot.slane %v70, %v244
  %v248 = vsel %vm165, %v240, 0
  %250 = vmatprep.subr.mxu0 0.0
  %251 = vmatpush1.msra.mxu0 0.0
  %252 = vmatprep.subr.mxu0 0.0
  %253 = vmatpush1.msra.mxu0 0.0
  %254 = vmatprep.subr.mxu0 0.0
  %255 = vmatpush1.msra.mxu0 0.0
  %256 = vmatprep.subr.mxu0 0.0
  %257 = vmatpush1.msra.mxu0 0.0
  %258 = vmatprep.subr.mxu0 0.0
  %259 = vmatpush1.msra.mxu0 0.0
  %260 = vmatprep.subr.mxu0 0.0
  %261 = vmatpush1.msra.mxu0 0.0
  %262 = vmatprep.subr.mxu0 0.0
  %263 = vmatpush1.msra.mxu0 0.0
  %264 = vmatprep.subr.mxu0 0.0
  %265 = vmatpush1.msra.mxu0 0.0
  %266 = vmatprep.subr.mxu0 0.0
  %267 = vmatpush1.msra.mxu0 %v67
  %268 = vmatprep.subr.mxu0 0.0
  %269 = vmatpush1.msra.mxu0 %v66
  %270 = vmatprep.subr.mxu0 0.0
  %271 = vmatpush1.msra.mxu0 %v65
  %272 = vmatprep.subr.mxu0 0.0
  %273 = vmatpush1.msra.mxu0 %v64
  %274 = vmatprep.subr.mxu0 0.0
  %275 = vmatpush1.msra.mxu0 %v63
  %276 = vmatprep.subr.mxu0 0.0
  %277 = vmatpush1.msra.mxu0 %v62
  %278 = vmatprep.subr.mxu0 0.0
  %279 = vmatpush1.msra.mxu0 %v61
  %280 = vmatprep.subr.mxu0 0.0
  %281 = vmatpush1.msra.mxu0 %v60
  %282 = vmatprep.subr.mxu0 0.0
  %283 = vmatpush2.msra.mxu0 0.0
  %284 = vmatprep.subr.mxu0 0.0
  %285 = vmatpush2.msra.mxu0 0.0
  %286 = vmatprep.subr.mxu0 0.0
  %287 = vmatpush2.msra.mxu0 0.0
  %288 = vmatprep.subr.mxu0 0.0
  %289 = vmatpush2.msra.mxu0 0.0
  %290 = vmatprep.subr.mxu0 0.0
  %291 = vmatpush2.msra.mxu0 0.0
  %292 = vmatprep.subr.mxu0 0.0
  %293 = vmatpush2.msra.mxu0 0.0
  %294 = vmatprep.subr.mxu0 0.0
  %295 = vmatpush2.msra.mxu0 0.0
  %296 = vmatprep.subr.mxu0 0.0
  %297 = vmatpush2.msra.mxu0 0.0
  %298 = vmatprep.subr.mxu0 0.0
  %299 = vmatpush2.msra.mxu0 0.0
  %300 = vmatprep.subr.mxu0 0.0
  %301 = vmatpush2.msra.mxu0 0.0
  %302 = vmatprep.subr.mxu0 0.0
  %303 = vmatpush2.msra.mxu0 0.0
  %304 = vmatprep.subr.mxu0 0.0
  %305 = vmatpush2.msra.mxu0 0.0
  %306 = vmatprep.subr.mxu0 0.0
  %307 = vmatpush2.msra.mxu0 0.0
  %308 = vmatprep.subr.mxu0 0.0
  %309 = vmatpush2.msra.mxu0 0.0
  %310 = vmatprep.subr.mxu0 0.0
  %311 = vmatpush2.msra.mxu0 0.0
  %312 = vmatprep.subr.mxu0 0.0
  %313 = vmatpush2.msra.mxu0 0.0
  %314 = vmatprep.mubr.f32.mxu0 0.0
  %315 = vmatmul.mubr.f32.gmra.mxu0 %v248
  %v316 = vpop.f32.mrf.mxu0
  %v317 = vadd.f32 %v245, %v316
  %v318 = vpop.f32.mrf.mxu0
  %319 = vdwg.mxu0
  %v320 = vtanh.pop %v317
  %s321 = scalar_lea.vmem %s0, 8
  %v322 = vld [vmem:[%s321] sm:$0xff]
  %v324 = vsel %vm83, %v157, 0
  %326 = vmatprep.subr.mxu0 0.0
  %327 = vmatpush1.msra.mxu0 %v47
  %328 = vmatprep.subr.mxu0 0.0
  %329 = vmatpush1.msra.mxu0 %v46
  %330 = vmatprep.subr.mxu0 0.0
  %331 = vmatpush1.msra.mxu0 %v45
  %332 = vmatprep.subr.mxu0 0.0
  %333 = vmatpush1.msra.mxu0 %v44
  %334 = vmatprep.subr.mxu0 0.0
  %335 = vmatpush1.msra.mxu0 %v43
  %336 = vmatprep.subr.mxu0 0.0
  %337 = vmatpush1.msra.mxu0 %v42
  %338 = vmatprep.subr.mxu0 0.0
  %339 = vmatpush1.msra.mxu0 %v41
  %340 = vmatprep.subr.mxu0 0.0
  %341 = vmatpush1.msra.mxu0 %v40
  %342 = vmatprep.subr.mxu0 0.0
  %343 = vmatpush1.msra.mxu0 %v39
  %344 = vmatprep.subr.mxu0 0.0
  %345 = vmatpush1.msra.mxu0 %v38
  %346 = vmatprep.subr.mxu0 0.0
  %347 = vmatpush1.msra.mxu0 %v37
  %348 = vmatprep.subr.mxu0 0.0
  %349 = vmatpush1.msra.mxu0 %v36
  %350 = vmatprep.subr.mxu0 0.0
  %351 = vmatpush1.msra.mxu0 %v35
  %352 = vmatprep.subr.mxu0 0.0
  %353 = vmatpush1.msra.mxu0 %v34
  %354 = vmatprep.subr.mxu0 0.0
  %355 = vmatpush1.msra.mxu0 %v33
  %356 = vmatprep.subr.mxu0 0.0
  %357 = vmatpush1.msra.mxu0 %v32
  %358 = vmatprep.subr.mxu0 0.0
  %359 = vmatpush2.msra.mxu0 0.0
  %360 = vmatprep.subr.mxu0 0.0
  %361 = vmatpush2.msra.mxu0 0.0
  %362 = vmatprep.subr.mxu0 0.0
  %363 = vmatpush2.msra.mxu0 0.0
  %364 = vmatprep.subr.mxu0 0.0
  %365 = vmatpush2.msra.mxu0 0.0
  %366 = vmatprep.subr.mxu0 0.0
  %367 = vmatpush2.msra.mxu0 0.0
  %368 = vmatprep.subr.mxu0 0.0
  %369 = vmatpush2.msra.mxu0 0.0
  %370 = vmatprep.subr.mxu0 0.0
  %371 = vmatpush2.msra.mxu0 0.0
  %372 = vmatprep.subr.mxu0 0.0
  %373 = vmatpush2.msra.mxu0 0.0
  %374 = vmatprep.subr.mxu0 0.0
  %375 = vmatpush2.msra.mxu0 0.0
  %376 = vmatprep.subr.mxu0 0.0
  %377 = vmatpush2.msra.mxu0 0.0
  %378 = vmatprep.subr.mxu0 0.0
  %379 = vmatpush2.msra.mxu0 0.0
  %380 = vmatprep.subr.mxu0 0.0
  %381 = vmatpush2.msra.mxu0 0.0
  %382 = vmatprep.subr.mxu0 0.0
  %383 = vmatpush2.msra.mxu0 %v51
  %384 = vmatprep.subr.mxu0 0.0
  %385 = vmatpush2.msra.mxu0 %v50
  %386 = vmatprep.subr.mxu0 0.0
  %387 = vmatpush2.msra.mxu0 %v49
  %388 = vmatprep.subr.mxu0 0.0
  %389 = vmatpush2.msra.mxu0 %v48
  %390 = vmatprep.mubr.f32.mxu0 %v324
  %391 = vmatmul.mubr.f32.gmra.mxu0 %v322
  %v392 = vpop.f32.mrf.mxu0
  %v393 = vadd.f32 %v81, %v392
  %v394 = vpop.f32.mrf.mxu0
  %395 = vdwg.mxu0
  %v396 = vtanh.pop %v393
  %398 = vrot.lane.b32.xlu0 %v239, 32
  %v399 = vpop.permute.xlu0 %398
  %v401 = vsel %vm83, %v396, %v399
  %v403 = vsel %vm165, %v401, 0
  %405 = vmatprep.subr.mxu0 0.0
  %406 = vmatpush1.msra.mxu0 0.0
  %407 = vmatprep.subr.mxu0 0.0
  %408 = vmatpush1.msra.mxu0 0.0
  %409 = vmatprep.subr.mxu0 0.0
  %410 = vmatpush1.msra.mxu0 0.0
  %411 = vmatprep.subr.mxu0 0.0
  %412 = vmatpush1.msra.mxu0 0.0
  %413 = vmatprep.subr.mxu0 0.0
  %414 = vmatpush1.msra.mxu0 0.0
  %415 = vmatprep.subr.mxu0 0.0
  %416 = vmatpush1.msra.mxu0 0.0
  %417 = vmatprep.subr.mxu0 0.0
  %418 = vmatpush1.msra.mxu0 0.0
  %419 = vmatprep.subr.mxu0 0.0
  %420 = vmatpush1.msra.mxu0 0.0
  %421 = vmatprep.subr.mxu0 0.0
  %422 = vmatpush1.msra.mxu0 %v59
  %423 = vmatprep.subr.mxu0 0.0
  %424 = vmatpush1.msra.mxu0 %v58
  %425 = vmatprep.subr.mxu0 0.0
  %426 = vmatpush1.msra.mxu0 %v57
  %427 = vmatprep.subr.mxu0 0.0
  %428 = vmatpush1.msra.mxu0 %v56
  %429 = vmatprep.subr.mxu0 0.0
  %430 = vmatpush1.msra.mxu0 %v55
  %431 = vmatprep.subr.mxu0 0.0
  %432 = vmatpush1.msra.mxu0 %v54
  %433 = vmatprep.subr.mxu0 0.0
  %434 = vmatpush1.msra.mxu0 %v53
  %435 = vmatprep.subr.mxu0 0.0
  %436 = vmatpush1.msra.mxu0 %v52
  %437 = vmatprep.subr.mxu0 0.0
  %438 = vmatpush2.msra.mxu0 0.0
  %439 = vmatprep.subr.mxu0 0.0
  %440 = vmatpush2.msra.mxu0 0.0
  %441 = vmatprep.subr.mxu0 0.0
  %442 = vmatpush2.msra.mxu0 0.0
  %443 = vmatprep.subr.mxu0 0.0
  %444 = vmatpush2.msra.mxu0 0.0
  %445 = vmatprep.subr.mxu0 0.0
  %446 = vmatpush2.msra.mxu0 0.0
  %447 = vmatprep.subr.mxu0 0.0
  %448 = vmatpush2.msra.mxu0 0.0
  %449 = vmatprep.subr.mxu0 0.0
  %450 = vmatpush2.msra.mxu0 0.0
  %451 = vmatprep.subr.mxu0 0.0
  %452 = vmatpush2.msra.mxu0 0.0
  %453 = vmatprep.subr.mxu0 0.0
  %454 = vmatpush2.msra.mxu0 0.0
  %455 = vmatprep.subr.mxu0 0.0
  %456 = vmatpush2.msra.mxu0 0.0
  %457 = vmatprep.subr.mxu0 0.0
  %458 = vmatpush2.msra.mxu0 0.0
  %459 = vmatprep.subr.mxu0 0.0
  %460 = vmatpush2.msra.mxu0 0.0
  %461 = vmatprep.subr.mxu0 0.0
  %462 = vmatpush2.msra.mxu0 0.0
  %463 = vmatprep.subr.mxu0 0.0
  %464 = vmatpush2.msra.mxu0 0.0
  %465 = vmatprep.subr.mxu0 0.0
  %466 = vmatpush2.msra.mxu0 0.0
  %467 = vmatprep.subr.mxu0 0.0
  %468 = vmatpush2.msra.mxu0 0.0
  %469 = vmatprep.mubr.f32.mxu0 0.0
  %470 = vmatmul.mubr.f32.gmra.mxu0 %v403
  %v471 = vpop.f32.mrf.mxu0
  %v472 = vadd.f32 %v163, %v471
  %v473 = vpop.f32.mrf.mxu0
  %474 = vdwg.mxu0
  %v475 = vtanh.pop %v472
  %477 = vrot.lane.b32.xlu0 %v320, 32
  %v478 = vpop.permute.xlu0 %477
  %v480 = vsel %vm83, %v475, %v478
  %v482 = vsel %vm165, %v480, 0
  %484 = vmatprep.subr.mxu0 0.0
  %485 = vmatpush1.msra.mxu0 0.0
  %486 = vmatprep.subr.mxu0 0.0
  %487 = vmatpush1.msra.mxu0 0.0
  %488 = vmatprep.subr.mxu0 0.0
  %489 = vmatpush1.msra.mxu0 0.0
  %490 = vmatprep.subr.mxu0 0.0
  %491 = vmatpush1.msra.mxu0 0.0
  %492 = vmatprep.subr.mxu0 0.0
  %493 = vmatpush1.msra.mxu0 0.0
  %494 = vmatprep.subr.mxu0 0.0
  %495 = vmatpush1.msra.mxu0 0.0
  %496 = vmatprep.subr.mxu0 0.0
  %497 = vmatpush1.msra.mxu0 0.0
  %498 = vmatprep.subr.mxu0 0.0
  %499 = vmatpush1.msra.mxu0 0.0
  %500 = vmatprep.subr.mxu0 0.0
  %501 = vmatpush1.msra.mxu0 %v67
  %502 = vmatprep.subr.mxu0 0.0
  %503 = vmatpush1.msra.mxu0 %v66
  %504 = vmatprep.subr.mxu0 0.0
  %505 = vmatpush1.msra.mxu0 %v65
  %506 = vmatprep.subr.mxu0 0.0
  %507 = vmatpush1.msra.mxu0 %v64
  %508 = vmatprep.subr.mxu0 0.0
  %509 = vmatpush1.msra.mxu0 %v63
  %510 = vmatprep.subr.mxu0 0.0
  %511 = vmatpush1.msra.mxu0 %v62
  %512 = vmatprep.subr.mxu0 0.0
  %513 = vmatpush1.msra.mxu0 %v61
  %514 = vmatprep.subr.mxu0 0.0
  %515 = vmatpush1.msra.mxu0 %v60
  %516 = vmatprep.subr.mxu0 0.0
  %517 = vmatpush2.msra.mxu0 0.0
  %518 = vmatprep.subr.mxu0 0.0
  %519 = vmatpush2.msra.mxu0 0.0
  %520 = vmatprep.subr.mxu0 0.0
  %521 = vmatpush2.msra.mxu0 0.0
  %522 = vmatprep.subr.mxu0 0.0
  %523 = vmatpush2.msra.mxu0 0.0
  %524 = vmatprep.subr.mxu0 0.0
  %525 = vmatpush2.msra.mxu0 0.0
  %526 = vmatprep.subr.mxu0 0.0
  %527 = vmatpush2.msra.mxu0 0.0
  %528 = vmatprep.subr.mxu0 0.0
  %529 = vmatpush2.msra.mxu0 0.0
  %530 = vmatprep.subr.mxu0 0.0
  %531 = vmatpush2.msra.mxu0 0.0
  %532 = vmatprep.subr.mxu0 0.0
  %533 = vmatpush2.msra.mxu0 0.0
  %534 = vmatprep.subr.mxu0 0.0
  %535 = vmatpush2.msra.mxu0 0.0
  %536 = vmatprep.subr.mxu0 0.0
  %537 = vmatpush2.msra.mxu0 0.0
  %538 = vmatprep.subr.mxu0 0.0
  %539 = vmatpush2.msra.mxu0 0.0
  %540 = vmatprep.subr.mxu0 0.0
  %541 = vmatpush2.msra.mxu0 0.0
  %542 = vmatprep.subr.mxu0 0.0
  %543 = vmatpush2.msra.mxu0 0.0
  %544 = vmatprep.subr.mxu0 0.0
  %545 = vmatpush2.msra.mxu0 0.0
  %546 = vmatprep.subr.mxu0 0.0
  %547 = vmatpush2.msra.mxu0 0.0
  %548 = vmatprep.mubr.f32.mxu0 0.0
  %549 = vmatmul.mubr.f32.gmra.mxu0 %v482
  %v550 = vpop.f32.mrf.mxu0
  %v551 = vadd.f32 %v245, %v550
  %v552 = vpop.f32.mrf.mxu0
  %553 = vdwg.mxu0
  %v554 = vtanh.pop %v551
  %s555 = scalar_lea.vmem %s0, 16
  %v556 = vld [vmem:[%s555] sm:$0xff]
  %v558 = vsel %vm83, %v396, 0
  %560 = vmatprep.subr.mxu0 0.0
  %561 = vmatpush1.msra.mxu0 %v47
  %562 = vmatprep.subr.mxu0 0.0
  %563 = vmatpush1.msra.mxu0 %v46
  %564 = vmatprep.subr.mxu0 0.0
  %565 = vmatpush1.msra.mxu0 %v45
  %566 = vmatprep.subr.mxu0 0.0
  %567 = vmatpush1.msra.mxu0 %v44
  %568 = vmatprep.subr.mxu0 0.0
  %569 = vmatpush1.msra.mxu0 %v43
  %570 = vmatprep.subr.mxu0 0.0
  %571 = vmatpush1.msra.mxu0 %v42
  %572 = vmatprep.subr.mxu0 0.0
  %573 = vmatpush1.msra.mxu0 %v41
  %574 = vmatprep.subr.mxu0 0.0
  %575 = vmatpush1.msra.mxu0 %v40
  %576 = vmatprep.subr.mxu0 0.0
  %577 = vmatpush1.msra.mxu0 %v39
  %578 = vmatprep.subr.mxu0 0.0
  %579 = vmatpush1.msra.mxu0 %v38
  %580 = vmatprep.subr.mxu0 0.0
  %581 = vmatpush1.msra.mxu0 %v37
  %582 = vmatprep.subr.mxu0 0.0
  %583 = vmatpush1.msra.mxu0 %v36
  %584 = vmatprep.subr.mxu0 0.0
  %585 = vmatpush1.msra.mxu0 %v35
  %586 = vmatprep.subr.mxu0 0.0
  %587 = vmatpush1.msra.mxu0 %v34
  %588 = vmatprep.subr.mxu0 0.0
  %589 = vmatpush1.msra.mxu0 %v33
  %590 = vmatprep.subr.mxu0 0.0
  %591 = vmatpush1.msra.mxu0 %v32
  %592 = vmatprep.subr.mxu0 0.0
  %593 = vmatpush2.msra.mxu0 0.0
  %594 = vmatprep.subr.mxu0 0.0
  %595 = vmatpush2.msra.mxu0 0.0
  %596 = vmatprep.subr.mxu0 0.0
  %597 = vmatpush2.msra.mxu0 0.0
  %598 = vmatprep.subr.mxu0 0.0
  %599 = vmatpush2.msra.mxu0 0.0
  %600 = vmatprep.subr.mxu0 0.0
  %601 = vmatpush2.msra.mxu0 0.0
  %602 = vmatprep.subr.mxu0 0.0
  %603 = vmatpush2.msra.mxu0 0.0
  %604 = vmatprep.subr.mxu0 0.0
  %605 = vmatpush2.msra.mxu0 0.0
  %606 = vmatprep.subr.mxu0 0.0
  %607 = vmatpush2.msra.mxu0 0.0
  %608 = vmatprep.subr.mxu0 0.0
  %609 = vmatpush2.msra.mxu0 0.0
  %610 = vmatprep.subr.mxu0 0.0
  %611 = vmatpush2.msra.mxu0 0.0
  %612 = vmatprep.subr.mxu0 0.0
  %613 = vmatpush2.msra.mxu0 0.0
  %614 = vmatprep.subr.mxu0 0.0
  %615 = vmatpush2.msra.mxu0 0.0
  %616 = vmatprep.subr.mxu0 0.0
  %617 = vmatpush2.msra.mxu0 %v51
  %618 = vmatprep.subr.mxu0 0.0
  %619 = vmatpush2.msra.mxu0 %v50
  %620 = vmatprep.subr.mxu0 0.0
  %621 = vmatpush2.msra.mxu0 %v49
  %622 = vmatprep.subr.mxu0 0.0
  %623 = vmatpush2.msra.mxu0 %v48
  %624 = vmatprep.mubr.f32.mxu0 %v558
  %625 = vmatmul.mubr.f32.gmra.mxu0 %v556
  %v626 = vpop.f32.mrf.mxu0
  %v627 = vadd.f32 %v81, %v626
  %v628 = vpop.f32.mrf.mxu0
  %629 = vdwg.mxu0
  %v630 = vtanh.pop %v627
  %632 = vrot.lane.b32.xlu0 %v475, 32
  %v633 = vpop.permute.xlu0 %632
  %v635 = vsel %vm83, %v630, %v633
  %v637 = vsel %vm165, %v635, 0
  %639 = vmatprep.subr.mxu0 0.0
  %640 = vmatpush1.msra.mxu0 0.0
  %641 = vmatprep.subr.mxu0 0.0
  %642 = vmatpush1.msra.mxu0 0.0
  %643 = vmatprep.subr.mxu0 0.0
  %644 = vmatpush1.msra.mxu0 0.0
  %645 = vmatprep.subr.mxu0 0.0
  %646 = vmatpush1.msra.mxu0 0.0
  %647 = vmatprep.subr.mxu0 0.0
  %648 = vmatpush1.msra.mxu0 0.0
  %649 = vmatprep.subr.mxu0 0.0
  %650 = vmatpush1.msra.mxu0 0.0
  %651 = vmatprep.subr.mxu0 0.0
  %652 = vmatpush1.msra.mxu0 0.0
  %653 = vmatprep.subr.mxu0 0.0
  %654 = vmatpush1.msra.mxu0 0.0
  %655 = vmatprep.subr.mxu0 0.0
  %656 = vmatpush1.msra.mxu0 %v59
  %657 = vmatprep.subr.mxu0 0.0
  %658 = vmatpush1.msra.mxu0 %v58
  %659 = vmatprep.subr.mxu0 0.0
  %660 = vmatpush1.msra.mxu0 %v57
  %661 = vmatprep.subr.mxu0 0.0
  %662 = vmatpush1.msra.mxu0 %v56
  %663 = vmatprep.subr.mxu0 0.0
  %664 = vmatpush1.msra.mxu0 %v55
  %665 = vmatprep.subr.mxu0 0.0
  %666 = vmatpush1.msra.mxu0 %v54
  %667 = vmatprep.subr.mxu0 0.0
  %668 = vmatpush1.msra.mxu0 %v53
  %669 = vmatprep.subr.mxu0 0.0
  %670 = vmatpush1.msra.mxu0 %v52
  %671 = vmatprep.subr.mxu0 0.0
  %672 = vmatpush2.msra.mxu0 0.0
  %673 = vmatprep.subr.mxu0 0.0
  %674 = vmatpush2.msra.mxu0 0.0
  %675 = vmatprep.subr.mxu0 0.0
  %676 = vmatpush2.msra.mxu0 0.0
  %677 = vmatprep.subr.mxu0 0.0
  %678 = vmatpush2.msra.mxu0 0.0
  %679 = vmatprep.subr.mxu0 0.0
  %680 = vmatpush2.msra.mxu0 0.0
  %681 = vmatprep.subr.mxu0 0.0
  %682 = vmatpush2.msra.mxu0 0.0
  %683 = vmatprep.subr.mxu0 0.0
  %684 = vmatpush2.msra.mxu0 0.0
  %685 = vmatprep.subr.mxu0 0.0
  %686 = vmatpush2.msra.mxu0 0.0
  %687 = vmatprep.subr.mxu0 0.0
  %688 = vmatpush2.msra.mxu0 0.0
  %689 = vmatprep.subr.mxu0 0.0
  %690 = vmatpush2.msra.mxu0 0.0
  %691 = vmatprep.subr.mxu0 0.0
  %692 = vmatpush2.msra.mxu0 0.0
  %693 = vmatprep.subr.mxu0 0.0
  %694 = vmatpush2.msra.mxu0 0.0
  %695 = vmatprep.subr.mxu0 0.0
  %696 = vmatpush2.msra.mxu0 0.0
  %697 = vmatprep.subr.mxu0 0.0
  %698 = vmatpush2.msra.mxu0 0.0
  %699 = vmatprep.subr.mxu0 0.0
  %700 = vmatpush2.msra.mxu0 0.0
  %701 = vmatprep.subr.mxu0 0.0
  %702 = vmatpush2.msra.mxu0 0.0
  %703 = vmatprep.mubr.f32.mxu0 0.0
  %704 = vmatmul.mubr.f32.gmra.mxu0 %v637
  %v705 = vpop.f32.mrf.mxu0
  %v706 = vadd.f32 %v163, %v705
  %v707 = vpop.f32.mrf.mxu0
  %708 = vdwg.mxu0
  %v709 = vtanh.pop %v706
  %711 = vrot.lane.b32.xlu0 %v554, 32
  %v712 = vpop.permute.xlu0 %711
  %v714 = vsel %vm83, %v709, %v712
  %v716 = vsel %vm165, %v714, 0
  %718 = vmatprep.subr.mxu0 0.0
  %719 = vmatpush1.msra.mxu0 0.0
  %720 = vmatprep.subr.mxu0 0.0
  %721 = vmatpush1.msra.mxu0 0.0
  %722 = vmatprep.subr.mxu0 0.0
  %723 = vmatpush1.msra.mxu0 0.0
  %724 = vmatprep.subr.mxu0 0.0
  %725 = vmatpush1.msra.mxu0 0.0
  %726 = vmatprep.subr.mxu0 0.0
  %727 = vmatpush1.msra.mxu0 0.0
  %728 = vmatprep.subr.mxu0 0.0
  %729 = vmatpush1.msra.mxu0 0.0
  %730 = vmatprep.subr.mxu0 0.0
  %731 = vmatpush1.msra.mxu0 0.0
  %732 = vmatprep.subr.mxu0 0.0
  %733 = vmatpush1.msra.mxu0 0.0
  %734 = vmatprep.subr.mxu0 0.0
  %735 = vmatpush1.msra.mxu0 %v67
  %736 = vmatprep.subr.mxu0 0.0
  %737 = vmatpush1.msra.mxu0 %v66
  %738 = vmatprep.subr.mxu0 0.0
  %739 = vmatpush1.msra.mxu0 %v65
  %740 = vmatprep.subr.mxu0 0.0
  %741 = vmatpush1.msra.mxu0 %v64
  %742 = vmatprep.subr.mxu0 0.0
  %743 = vmatpush1.msra.mxu0 %v63
  %744 = vmatprep.subr.mxu0 0.0
  %745 = vmatpush1.msra.mxu0 %v62
  %746 = vmatprep.subr.mxu0 0.0
  %747 = vmatpush1.msra.mxu0 %v61
  %748 = vmatprep.subr.mxu0 0.0
  %749 = vmatpush1.msra.mxu0 %v60
  %750 = vmatprep.subr.mxu0 0.0
  %751 = vmatpush2.msra.mxu0 0.0
  %752 = vmatprep.subr.mxu0 0.0
  %753 = vmatpush2.msra.mxu0 0.0
  %754 = vmatprep.subr.mxu0 0.0
  %755 = vmatpush2.msra.mxu0 0.0
  %756 = vmatprep.subr.mxu0 0.0
  %757 = vmatpush2.msra.mxu0 0.0
  %758 = vmatprep.subr.mxu0 0.0
  %759 = vmatpush2.msra.mxu0 0.0
  %760 = vmatprep.subr.mxu0 0.0
  %761 = vmatpush2.msra.mxu0 0.0
  %762 = vmatprep.subr.mxu0 0.0
  %763 = vmatpush2.msra.mxu0 0.0
  %764 = vmatprep.subr.mxu0 0.0
  %765 = vmatpush2.msra.mxu0 0.0
  %766 = vmatprep.subr.mxu0 0.0
  %767 = vmatpush2.msra.mxu0 0.0
  %768 = vmatprep.subr.mxu0 0.0
  %769 = vmatpush2.msra.mxu0 0.0
  %770 = vmatprep.subr.mxu0 0.0
  %771 = vmatpush2.msra.mxu0 0.0
  %772 = vmatprep.subr.mxu0 0.0
  %773 = vmatpush2.msra.mxu0 0.0
  %774 = vmatprep.subr.mxu0 0.0
  %775 = vmatpush2.msra.mxu0 0.0
  %776 = vmatprep.subr.mxu0 0.0
  %777 = vmatpush2.msra.mxu0 0.0
  %778 = vmatprep.subr.mxu0 0.0
  %779 = vmatpush2.msra.mxu0 0.0
  %780 = vmatprep.subr.mxu0 0.0
  %781 = vmatpush2.msra.mxu0 0.0
  %782 = vmatprep.mubr.f32.mxu0 0.0
  %783 = vmatmul.mubr.f32.gmra.mxu0 %v716
  %v784 = vpop.f32.mrf.mxu0
  %v785 = vadd.f32 %v245, %v784
  %v786 = vpop.f32.mrf.mxu0
  %787 = vdwg.mxu0
  %v788 = vtanh.pop %v785
  %s789 = scalar_lea.vmem %s0, 24
  %v790 = vld [vmem:[%s789] sm:$0xff]
  %v792 = vsel %vm83, %v630, 0
  %794 = vmatprep.subr.mxu0 0.0
  %795 = vmatpush1.msra.mxu0 %v47
  %796 = vmatprep.subr.mxu0 0.0
  %797 = vmatpush1.msra.mxu0 %v46
  %798 = vmatprep.subr.mxu0 0.0
  %799 = vmatpush1.msra.mxu0 %v45
  %800 = vmatprep.subr.mxu0 0.0
  %801 = vmatpush1.msra.mxu0 %v44
  %802 = vmatprep.subr.mxu0 0.0
  %803 = vmatpush1.msra.mxu0 %v43
  %804 = vmatprep.subr.mxu0 0.0
  %805 = vmatpush1.msra.mxu0 %v42
  %806 = vmatprep.subr.mxu0 0.0
  %807 = vmatpush1.msra.mxu0 %v41
  %808 = vmatprep.subr.mxu0 0.0
  %809 = vmatpush1.msra.mxu0 %v40
  %810 = vmatprep.subr.mxu0 0.0
  %811 = vmatpush1.msra.mxu0 %v39
  %812 = vmatprep.subr.mxu0 0.0
  %813 = vmatpush1.msra.mxu0 %v38
  %814 = vmatprep.subr.mxu0 0.0
  %815 = vmatpush1.msra.mxu0 %v37
  %816 = vmatprep.subr.mxu0 0.0
  %817 = vmatpush1.msra.mxu0 %v36
  %818 = vmatprep.subr.mxu0 0.0
  %819 = vmatpush1.msra.mxu0 %v35
  %820 = vmatprep.subr.mxu0 0.0
  %821 = vmatpush1.msra.mxu0 %v34
  %822 = vmatprep.subr.mxu0 0.0
  %823 = vmatpush1.msra.mxu0 %v33
  %824 = vmatprep.subr.mxu0 0.0
  %825 = vmatpush1.msra.mxu0 %v32
  %826 = vmatprep.subr.mxu0 0.0
  %827 = vmatpush2.msra.mxu0 0.0
  %828 = vmatprep.subr.mxu0 0.0
  %829 = vmatpush2.msra.mxu0 0.0
  %830 = vmatprep.subr.mxu0 0.0
  %831 = vmatpush2.msra.mxu0 0.0
  %832 = vmatprep.subr.mxu0 0.0
  %833 = vmatpush2.msra.mxu0 0.0
  %834 = vmatprep.subr.mxu0 0.0
  %835 = vmatpush2.msra.mxu0 0.0
  %836 = vmatprep.subr.mxu0 0.0
  %837 = vmatpush2.msra.mxu0 0.0
  %838 = vmatprep.subr.mxu0 0.0
  %839 = vmatpush2.msra.mxu0 0.0
  %840 = vmatprep.subr.mxu0 0.0
  %841 = vmatpush2.msra.mxu0 0.0
  %842 = vmatprep.subr.mxu0 0.0
  %843 = vmatpush2.msra.mxu0 0.0
  %844 = vmatprep.subr.mxu0 0.0
  %845 = vmatpush2.msra.mxu0 0.0
  %846 = vmatprep.subr.mxu0 0.0
  %847 = vmatpush2.msra.mxu0 0.0
  %848 = vmatprep.subr.mxu0 0.0
  %849 = vmatpush2.msra.mxu0 0.0
  %850 = vmatprep.subr.mxu0 0.0
  %851 = vmatpush2.msra.mxu0 %v51
  %852 = vmatprep.subr.mxu0 0.0
  %853 = vmatpush2.msra.mxu0 %v50
  %854 = vmatprep.subr.mxu0 0.0
  %855 = vmatpush2.msra.mxu0 %v49
  %856 = vmatprep.subr.mxu0 0.0
  %857 = vmatpush2.msra.mxu0 %v48
  %858 = vmatprep.mubr.f32.mxu0 %v792
  %859 = vmatmul.mubr.f32.gmra.mxu0 %v790
  %v860 = vpop.f32.mrf.mxu0
  %v861 = vadd.f32 %v81, %v860
  %v862 = vpop.f32.mrf.mxu0
  %863 = vdwg.mxu0
  %v864 = vtanh.pop %v861
  %866 = vrot.lane.b32.xlu0 %v709, 32
  %v867 = vpop.permute.xlu0 %866
  %v869 = vsel %vm83, %v864, %v867
  %v871 = vsel %vm165, %v869, 0
  %873 = vmatprep.subr.mxu0 0.0
  %874 = vmatpush1.msra.mxu0 0.0
  %875 = vmatprep.subr.mxu0 0.0
  %876 = vmatpush1.msra.mxu0 0.0
  %877 = vmatprep.subr.mxu0 0.0
  %878 = vmatpush1.msra.mxu0 0.0
  %879 = vmatprep.subr.mxu0 0.0
  %880 = vmatpush1.msra.mxu0 0.0
  %881 = vmatprep.subr.mxu0 0.0
  %882 = vmatpush1.msra.mxu0 0.0
  %883 = vmatprep.subr.mxu0 0.0
  %884 = vmatpush1.msra.mxu0 0.0
  %885 = vmatprep.subr.mxu0 0.0
  %886 = vmatpush1.msra.mxu0 0.0
  %887 = vmatprep.subr.mxu0 0.0
  %888 = vmatpush1.msra.mxu0 0.0
  %889 = vmatprep.subr.mxu0 0.0
  %890 = vmatpush1.msra.mxu0 %v59
  %891 = vmatprep.subr.mxu0 0.0
  %892 = vmatpush1.msra.mxu0 %v58
  %893 = vmatprep.subr.mxu0 0.0
  %894 = vmatpush1.msra.mxu0 %v57
  %895 = vmatprep.subr.mxu0 0.0
  %896 = vmatpush1.msra.mxu0 %v56
  %897 = vmatprep.subr.mxu0 0.0
  %898 = vmatpush1.msra.mxu0 %v55
  %899 = vmatprep.subr.mxu0 0.0
  %900 = vmatpush1.msra.mxu0 %v54
  %901 = vmatprep.subr.mxu0 0.0
  %902 = vmatpush1.msra.mxu0 %v53
  %903 = vmatprep.subr.mxu0 0.0
  %904 = vmatpush1.msra.mxu0 %v52
  %905 = vmatprep.subr.mxu0 0.0
  %906 = vmatpush2.msra.mxu0 0.0
  %907 = vmatprep.subr.mxu0 0.0
  %908 = vmatpush2.msra.mxu0 0.0
  %909 = vmatprep.subr.mxu0 0.0
  %910 = vmatpush2.msra.mxu0 0.0
  %911 = vmatprep.subr.mxu0 0.0
  %912 = vmatpush2.msra.mxu0 0.0
  %913 = vmatprep.subr.mxu0 0.0
  %914 = vmatpush2.msra.mxu0 0.0
  %915 = vmatprep.subr.mxu0 0.0
  %916 = vmatpush2.msra.mxu0 0.0
  %917 = vmatprep.subr.mxu0 0.0
  %918 = vmatpush2.msra.mxu0 0.0
  %919 = vmatprep.subr.mxu0 0.0
  %920 = vmatpush2.msra.mxu0 0.0
  %921 = vmatprep.subr.mxu0 0.0
  %922 = vmatpush2.msra.mxu0 0.0
  %923 = vmatprep.subr.mxu0 0.0
  %924 = vmatpush2.msra.mxu0 0.0
  %925 = vmatprep.subr.mxu0 0.0
  %926 = vmatpush2.msra.mxu0 0.0
  %927 = vmatprep.subr.mxu0 0.0
  %928 = vmatpush2.msra.mxu0 0.0
  %929 = vmatprep.subr.mxu0 0.0
  %930 = vmatpush2.msra.mxu0 0.0
  %931 = vmatprep.subr.mxu0 0.0
  %932 = vmatpush2.msra.mxu0 0.0
  %933 = vmatprep.subr.mxu0 0.0
  %934 = vmatpush2.msra.mxu0 0.0
  %935 = vmatprep.subr.mxu0 0.0
  %936 = vmatpush2.msra.mxu0 0.0
  %937 = vmatprep.mubr.f32.mxu0 0.0
  %938 = vmatmul.mubr.f32.gmra.mxu0 %v871
  %v939 = vpop.f32.mrf.mxu0
  %v940 = vadd.f32 %v163, %v939
  %v941 = vpop.f32.mrf.mxu0
  %942 = vdwg.mxu0
  %v943 = vtanh.pop %v940
  %945 = vrot.lane.b32.xlu0 %v788, 32
  %v946 = vpop.permute.xlu0 %945
  %v948 = vsel %vm83, %v943, %v946
  %v950 = vsel %vm165, %v948, 0
  %952 = vmatprep.subr.mxu0 0.0
  %953 = vmatpush1.msra.mxu0 0.0
  %954 = vmatprep.subr.mxu0 0.0
  %955 = vmatpush1.msra.mxu0 0.0
  %956 = vmatprep.subr.mxu0 0.0
  %957 = vmatpush1.msra.mxu0 0.0
  %958 = vmatprep.subr.mxu0 0.0
  %959 = vmatpush1.msra.mxu0 0.0
  %960 = vmatprep.subr.mxu0 0.0
  %961 = vmatpush1.msra.mxu0 0.0
  %962 = vmatprep.subr.mxu0 0.0
  %963 = vmatpush1.msra.mxu0 0.0
  %964 = vmatprep.subr.mxu0 0.0
  %965 = vmatpush1.msra.mxu0 0.0
  %966 = vmatprep.subr.mxu0 0.0
  %967 = vmatpush1.msra.mxu0 0.0
  %968 = vmatprep.subr.mxu0 0.0
  %969 = vmatpush1.msra.mxu0 %v67
  %970 = vmatprep.subr.mxu0 0.0
  %971 = vmatpush1.msra.mxu0 %v66
  %972 = vmatprep.subr.mxu0 0.0
  %973 = vmatpush1.msra.mxu0 %v65
  %974 = vmatprep.subr.mxu0 0.0
  %975 = vmatpush1.msra.mxu0 %v64
  %976 = vmatprep.subr.mxu0 0.0
  %977 = vmatpush1.msra.mxu0 %v63
  %978 = vmatprep.subr.mxu0 0.0
  %979 = vmatpush1.msra.mxu0 %v62
  %980 = vmatprep.subr.mxu0 0.0
  %981 = vmatpush1.msra.mxu0 %v61
  %982 = vmatprep.subr.mxu0 0.0
  %983 = vmatpush1.msra.mxu0 %v60
  %984 = vmatprep.subr.mxu0 0.0
  %985 = vmatpush2.msra.mxu0 0.0
  %986 = vmatprep.subr.mxu0 0.0
  %987 = vmatpush2.msra.mxu0 0.0
  %988 = vmatprep.subr.mxu0 0.0
  %989 = vmatpush2.msra.mxu0 0.0
  %990 = vmatprep.subr.mxu0 0.0
  %991 = vmatpush2.msra.mxu0 0.0
  %992 = vmatprep.subr.mxu0 0.0
  %993 = vmatpush2.msra.mxu0 0.0
  %994 = vmatprep.subr.mxu0 0.0
  %995 = vmatpush2.msra.mxu0 0.0
  %996 = vmatprep.subr.mxu0 0.0
  %997 = vmatpush2.msra.mxu0 0.0
  %998 = vmatprep.subr.mxu0 0.0
  %999 = vmatpush2.msra.mxu0 0.0
  %1000 = vmatprep.subr.mxu0 0.0
  %1001 = vmatpush2.msra.mxu0 0.0
  %1002 = vmatprep.subr.mxu0 0.0
  %1003 = vmatpush2.msra.mxu0 0.0
  %1004 = vmatprep.subr.mxu0 0.0
  %1005 = vmatpush2.msra.mxu0 0.0
  %1006 = vmatprep.subr.mxu0 0.0
  %1007 = vmatpush2.msra.mxu0 0.0
  %1008 = vmatprep.subr.mxu0 0.0
  %1009 = vmatpush2.msra.mxu0 0.0
  %1010 = vmatprep.subr.mxu0 0.0
  %1011 = vmatpush2.msra.mxu0 0.0
  %1012 = vmatprep.subr.mxu0 0.0
  %1013 = vmatpush2.msra.mxu0 0.0
  %1014 = vmatprep.subr.mxu0 0.0
  %1015 = vmatpush2.msra.mxu0 0.0
  %1016 = vmatprep.mubr.f32.mxu0 0.0
  %1017 = vmatmul.mubr.f32.gmra.mxu0 %v950
  %v1018 = vpop.f32.mrf.mxu0
  %v1019 = vadd.f32 %v245, %v1018
  %v1020 = vpop.f32.mrf.mxu0
  %1021 = vdwg.mxu0
  %v1022 = vtanh.pop %v1019
  %s1023 = scalar_lea.vmem %s0, 32
  %v1024 = vld [vmem:[%s1023] sm:$0xff]
  %v1026 = vsel %vm83, %v864, 0
  %1028 = vmatprep.subr.mxu0 0.0
  %1029 = vmatpush1.msra.mxu0 %v47
  %1030 = vmatprep.subr.mxu0 0.0
  %1031 = vmatpush1.msra.mxu0 %v46
  %1032 = vmatprep.subr.mxu0 0.0
  %1033 = vmatpush1.msra.mxu0 %v45
  %1034 = vmatprep.subr.mxu0 0.0
  %1035 = vmatpush1.msra.mxu0 %v44
  %1036 = vmatprep.subr.mxu0 0.0
  %1037 = vmatpush1.msra.mxu0 %v43
  %1038 = vmatprep.subr.mxu0 0.0
  %1039 = vmatpush1.msra.mxu0 %v42
  %1040 = vmatprep.subr.mxu0 0.0
  %1041 = vmatpush1.msra.mxu0 %v41
  %1042 = vmatprep.subr.mxu0 0.0
  %1043 = vmatpush1.msra.mxu0 %v40
  %1044 = vmatprep.subr.mxu0 0.0
  %1045 = vmatpush1.msra.mxu0 %v39
  %1046 = vmatprep.subr.mxu0 0.0
  %1047 = vmatpush1.msra.mxu0 %v38
  %1048 = vmatprep.subr.mxu0 0.0
  %1049 = vmatpush1.msra.mxu0 %v37
  %1050 = vmatprep.subr.mxu0 0.0
  %1051 = vmatpush1.msra.mxu0 %v36
  %1052 = vmatprep.subr.mxu0 0.0
  %1053 = vmatpush1.msra.mxu0 %v35
  %1054 = vmatprep.subr.mxu0 0.0
  %1055 = vmatpush1.msra.mxu0 %v34
  %1056 = vmatprep.subr.mxu0 0.0
  %1057 = vmatpush1.msra.mxu0 %v33
  %1058 = vmatprep.subr.mxu0 0.0
  %1059 = vmatpush1.msra.mxu0 %v32
  %1060 = vmatprep.subr.mxu0 0.0
  %1061 = vmatpush2.msra.mxu0 0.0
  %1062 = vmatprep.subr.mxu0 0.0
  %1063 = vmatpush2.msra.mxu0 0.0
  %1064 = vmatprep.subr.mxu0 0.0
  %1065 = vmatpush2.msra.mxu0 0.0
  %1066 = vmatprep.subr.mxu0 0.0
  %1067 = vmatpush2.msra.mxu0 0.0
  %1068 = vmatprep.subr.mxu0 0.0
  %1069 = vmatpush2.msra.mxu0 0.0
  %1070 = vmatprep.subr.mxu0 0.0
  %1071 = vmatpush2.msra.mxu0 0.0
  %1072 = vmatprep.subr.mxu0 0.0
  %1073 = vmatpush2.msra.mxu0 0.0
  %1074 = vmatprep.subr.mxu0 0.0
  %1075 = vmatpush2.msra.mxu0 0.0
  %1076 = vmatprep.subr.mxu0 0.0
  %1077 = vmatpush2.msra.mxu0 0.0
  %1078 = vmatprep.subr.mxu0 0.0
  %1079 = vmatpush2.msra.mxu0 0.0
  %1080 = vmatprep.subr.mxu0 0.0
  %1081 = vmatpush2.msra.mxu0 0.0
  %1082 = vmatprep.subr.mxu0 0.0
  %1083 = vmatpush2.msra.mxu0 0.0
  %1084 = vmatprep.subr.mxu0 0.0
  %1085 = vmatpush2.msra.mxu0 %v51
  %1086 = vmatprep.subr.mxu0 0.0
  %1087 = vmatpush2.msra.mxu0 %v50
  %1088 = vmatprep.subr.mxu0 0.0
  %1089 = vmatpush2.msra.mxu0 %v49
  %1090 = vmatprep.subr.mxu0 0.0
  %1091 = vmatpush2.msra.mxu0 %v48
  %1092 = vmatprep.mubr.f32.mxu0 %v1026
  %1093 = vmatmul.mubr.f32.gmra.mxu0 %v1024
  %v1094 = vpop.f32.mrf.mxu0
  %v1095 = vadd.f32 %v81, %v1094
  %v1096 = vpop.f32.mrf.mxu0
  %1097 = vdwg.mxu0
  %v1098 = vtanh.pop %v1095
  %1100 = vrot.lane.b32.xlu0 %v943, 32
  %v1101 = vpop.permute.xlu0 %1100
  %v1103 = vsel %vm83, %v1098, %v1101
  %v1105 = vsel %vm165, %v1103, 0
  %1107 = vmatprep.subr.mxu0 0.0
  %1108 = vmatpush1.msra.mxu0 0.0
  %1109 = vmatprep.subr.mxu0 0.0
  %1110 = vmatpush1.msra.mxu0 0.0
  %1111 = vmatprep.subr.mxu0 0.0
  %1112 = vmatpush1.msra.mxu0 0.0
  %1113 = vmatprep.subr.mxu0 0.0
  %1114 = vmatpush1.msra.mxu0 0.0
  %1115 = vmatprep.subr.mxu0 0.0
  %1116 = vmatpush1.msra.mxu0 0.0
  %1117 = vmatprep.subr.mxu0 0.0
  %1118 = vmatpush1.msra.mxu0 0.0
  %1119 = vmatprep.subr.mxu0 0.0
  %1120 = vmatpush1.msra.mxu0 0.0
  %1121 = vmatprep.subr.mxu0 0.0
  %1122 = vmatpush1.msra.mxu0 0.0
  %1123 = vmatprep.subr.mxu0 0.0
  %1124 = vmatpush1.msra.mxu0 %v59
  %1125 = vmatprep.subr.mxu0 0.0
  %1126 = vmatpush1.msra.mxu0 %v58
  %1127 = vmatprep.subr.mxu0 0.0
  %1128 = vmatpush1.msra.mxu0 %v57
  %1129 = vmatprep.subr.mxu0 0.0
  %1130 = vmatpush1.msra.mxu0 %v56
  %1131 = vmatprep.subr.mxu0 0.0
  %1132 = vmatpush1.msra.mxu0 %v55
  %1133 = vmatprep.subr.mxu0 0.0
  %1134 = vmatpush1.msra.mxu0 %v54
  %1135 = vmatprep.subr.mxu0 0.0
  %1136 = vmatpush1.msra.mxu0 %v53
  %1137 = vmatprep.subr.mxu0 0.0
  %1138 = vmatpush1.msra.mxu0 %v52
  %1139 = vmatprep.subr.mxu0 0.0
  %1140 = vmatpush2.msra.mxu0 0.0
  %1141 = vmatprep.subr.mxu0 0.0
  %1142 = vmatpush2.msra.mxu0 0.0
  %1143 = vmatprep.subr.mxu0 0.0
  %1144 = vmatpush2.msra.mxu0 0.0
  %1145 = vmatprep.subr.mxu0 0.0
  %1146 = vmatpush2.msra.mxu0 0.0
  %1147 = vmatprep.subr.mxu0 0.0
  %1148 = vmatpush2.msra.mxu0 0.0
  %1149 = vmatprep.subr.mxu0 0.0
  %1150 = vmatpush2.msra.mxu0 0.0
  %1151 = vmatprep.subr.mxu0 0.0
  %1152 = vmatpush2.msra.mxu0 0.0
  %1153 = vmatprep.subr.mxu0 0.0
  %1154 = vmatpush2.msra.mxu0 0.0
  %1155 = vmatprep.subr.mxu0 0.0
  %1156 = vmatpush2.msra.mxu0 0.0
  %1157 = vmatprep.subr.mxu0 0.0
  %1158 = vmatpush2.msra.mxu0 0.0
  %1159 = vmatprep.subr.mxu0 0.0
  %1160 = vmatpush2.msra.mxu0 0.0
  %1161 = vmatprep.subr.mxu0 0.0
  %1162 = vmatpush2.msra.mxu0 0.0
  %1163 = vmatprep.subr.mxu0 0.0
  %1164 = vmatpush2.msra.mxu0 0.0
  %1165 = vmatprep.subr.mxu0 0.0
  %1166 = vmatpush2.msra.mxu0 0.0
  %1167 = vmatprep.subr.mxu0 0.0
  %1168 = vmatpush2.msra.mxu0 0.0
  %1169 = vmatprep.subr.mxu0 0.0
  %1170 = vmatpush2.msra.mxu0 0.0
  %1171 = vmatprep.mubr.f32.mxu0 0.0
  %1172 = vmatmul.mubr.f32.gmra.mxu0 %v1105
  %v1173 = vpop.f32.mrf.mxu0
  %v1174 = vadd.f32 %v163, %v1173
  %v1175 = vpop.f32.mrf.mxu0
  %1176 = vdwg.mxu0
  %v1177 = vtanh.pop %v1174
  %1179 = vrot.lane.b32.xlu0 %v1022, 32
  %v1180 = vpop.permute.xlu0 %1179
  %v1182 = vsel %vm83, %v1177, %v1180
  %v1184 = vsel %vm165, %v1182, 0
  %1186 = vmatprep.subr.mxu0 0.0
  %1187 = vmatpush1.msra.mxu0 0.0
  %1188 = vmatprep.subr.mxu0 0.0
  %1189 = vmatpush1.msra.mxu0 0.0
  %1190 = vmatprep.subr.mxu0 0.0
  %1191 = vmatpush1.msra.mxu0 0.0
  %1192 = vmatprep.subr.mxu0 0.0
  %1193 = vmatpush1.msra.mxu0 0.0
  %1194 = vmatprep.subr.mxu0 0.0
  %1195 = vmatpush1.msra.mxu0 0.0
  %1196 = vmatprep.subr.mxu0 0.0
  %1197 = vmatpush1.msra.mxu0 0.0
  %1198 = vmatprep.subr.mxu0 0.0
  %1199 = vmatpush1.msra.mxu0 0.0
  %1200 = vmatprep.subr.mxu0 0.0
  %1201 = vmatpush1.msra.mxu0 0.0
  %1202 = vmatprep.subr.mxu0 0.0
  %1203 = vmatpush1.msra.mxu0 %v67
  %1204 = vmatprep.subr.mxu0 0.0
  %1205 = vmatpush1.msra.mxu0 %v66
  %1206 = vmatprep.subr.mxu0 0.0
  %1207 = vmatpush1.msra.mxu0 %v65
  %1208 = vmatprep.subr.mxu0 0.0
  %1209 = vmatpush1.msra.mxu0 %v64
  %1210 = vmatprep.subr.mxu0 0.0
  %1211 = vmatpush1.msra.mxu0 %v63
  %1212 = vmatprep.subr.mxu0 0.0
  %1213 = vmatpush1.msra.mxu0 %v62
  %1214 = vmatprep.subr.mxu0 0.0
  %1215 = vmatpush1.msra.mxu0 %v61
  %1216 = vmatprep.subr.mxu0 0.0
  %1217 = vmatpush1.msra.mxu0 %v60
  %1218 = vmatprep.subr.mxu0 0.0
  %1219 = vmatpush2.msra.mxu0 0.0
  %1220 = vmatprep.subr.mxu0 0.0
  %1221 = vmatpush2.msra.mxu0 0.0
  %1222 = vmatprep.subr.mxu0 0.0
  %1223 = vmatpush2.msra.mxu0 0.0
  %1224 = vmatprep.subr.mxu0 0.0
  %1225 = vmatpush2.msra.mxu0 0.0
  %1226 = vmatprep.subr.mxu0 0.0
  %1227 = vmatpush2.msra.mxu0 0.0
  %1228 = vmatprep.subr.mxu0 0.0
  %1229 = vmatpush2.msra.mxu0 0.0
  %1230 = vmatprep.subr.mxu0 0.0
  %1231 = vmatpush2.msra.mxu0 0.0
  %1232 = vmatprep.subr.mxu0 0.0
  %1233 = vmatpush2.msra.mxu0 0.0
  %1234 = vmatprep.subr.mxu0 0.0
  %1235 = vmatpush2.msra.mxu0 0.0
  %1236 = vmatprep.subr.mxu0 0.0
  %1237 = vmatpush2.msra.mxu0 0.0
  %1238 = vmatprep.subr.mxu0 0.0
  %1239 = vmatpush2.msra.mxu0 0.0
  %1240 = vmatprep.subr.mxu0 0.0
  %1241 = vmatpush2.msra.mxu0 0.0
  %1242 = vmatprep.subr.mxu0 0.0
  %1243 = vmatpush2.msra.mxu0 0.0
  %1244 = vmatprep.subr.mxu0 0.0
  %1245 = vmatpush2.msra.mxu0 0.0
  %1246 = vmatprep.subr.mxu0 0.0
  %1247 = vmatpush2.msra.mxu0 0.0
  %1248 = vmatprep.subr.mxu0 0.0
  %1249 = vmatpush2.msra.mxu0 0.0
  %1250 = vmatprep.mubr.f32.mxu0 0.0
  %1251 = vmatmul.mubr.f32.gmra.mxu0 %v1184
  %v1252 = vpop.f32.mrf.mxu0
  %v1253 = vadd.f32 %v245, %v1252
  %v1254 = vpop.f32.mrf.mxu0
  %1255 = vdwg.mxu0
  %v1256 = vtanh.pop %v1253
  %s1257 = scalar_lea.vmem %s0, 40
  %v1258 = vld [vmem:[%s1257] sm:$0xff]
  %v1260 = vsel %vm83, %v1098, 0
  %1262 = vmatprep.subr.mxu0 0.0
  %1263 = vmatpush1.msra.mxu0 %v47
  %1264 = vmatprep.subr.mxu0 0.0
  %1265 = vmatpush1.msra.mxu0 %v46
  %1266 = vmatprep.subr.mxu0 0.0
  %1267 = vmatpush1.msra.mxu0 %v45
  %1268 = vmatprep.subr.mxu0 0.0
  %1269 = vmatpush1.msra.mxu0 %v44
  %1270 = vmatprep.subr.mxu0 0.0
  %1271 = vmatpush1.msra.mxu0 %v43
  %1272 = vmatprep.subr.mxu0 0.0
  %1273 = vmatpush1.msra.mxu0 %v42
  %1274 = vmatprep.subr.mxu0 0.0
  %1275 = vmatpush1.msra.mxu0 %v41
  %1276 = vmatprep.subr.mxu0 0.0
  %1277 = vmatpush1.msra.mxu0 %v40
  %1278 = vmatprep.subr.mxu0 0.0
  %1279 = vmatpush1.msra.mxu0 %v39
  %1280 = vmatprep.subr.mxu0 0.0
  %1281 = vmatpush1.msra.mxu0 %v38
  %1282 = vmatprep.subr.mxu0 0.0
  %1283 = vmatpush1.msra.mxu0 %v37
  %1284 = vmatprep.subr.mxu0 0.0
  %1285 = vmatpush1.msra.mxu0 %v36
  %1286 = vmatprep.subr.mxu0 0.0
  %1287 = vmatpush1.msra.mxu0 %v35
  %1288 = vmatprep.subr.mxu0 0.0
  %1289 = vmatpush1.msra.mxu0 %v34
  %1290 = vmatprep.subr.mxu0 0.0
  %1291 = vmatpush1.msra.mxu0 %v33
  %1292 = vmatprep.subr.mxu0 0.0
  %1293 = vmatpush1.msra.mxu0 %v32
  %1294 = vmatprep.subr.mxu0 0.0
  %1295 = vmatpush2.msra.mxu0 0.0
  %1296 = vmatprep.subr.mxu0 0.0
  %1297 = vmatpush2.msra.mxu0 0.0
  %1298 = vmatprep.subr.mxu0 0.0
  %1299 = vmatpush2.msra.mxu0 0.0
  %1300 = vmatprep.subr.mxu0 0.0
  %1301 = vmatpush2.msra.mxu0 0.0
  %1302 = vmatprep.subr.mxu0 0.0
  %1303 = vmatpush2.msra.mxu0 0.0
  %1304 = vmatprep.subr.mxu0 0.0
  %1305 = vmatpush2.msra.mxu0 0.0
  %1306 = vmatprep.subr.mxu0 0.0
  %1307 = vmatpush2.msra.mxu0 0.0
  %1308 = vmatprep.subr.mxu0 0.0
  %1309 = vmatpush2.msra.mxu0 0.0
  %1310 = vmatprep.subr.mxu0 0.0
  %1311 = vmatpush2.msra.mxu0 0.0
  %1312 = vmatprep.subr.mxu0 0.0
  %1313 = vmatpush2.msra.mxu0 0.0
  %1314 = vmatprep.subr.mxu0 0.0
  %1315 = vmatpush2.msra.mxu0 0.0
  %1316 = vmatprep.subr.mxu0 0.0
  %1317 = vmatpush2.msra.mxu0 0.0
  %1318 = vmatprep.subr.mxu0 0.0
  %1319 = vmatpush2.msra.mxu0 %v51
  %1320 = vmatprep.subr.mxu0 0.0
  %1321 = vmatpush2.msra.mxu0 %v50
  %1322 = vmatprep.subr.mxu0 0.0
  %1323 = vmatpush2.msra.mxu0 %v49
  %1324 = vmatprep.subr.mxu0 0.0
  %1325 = vmatpush2.msra.mxu0 %v48
  %1326 = vmatprep.mubr.f32.mxu0 %v1260
  %1327 = vmatmul.mubr.f32.gmra.mxu0 %v1258
  %v1328 = vpop.f32.mrf.mxu0
  %v1329 = vadd.f32 %v81, %v1328
  %v1330 = vpop.f32.mrf.mxu0
  %1331 = vdwg.mxu0
  %v1332 = vtanh.pop %v1329
  %1334 = vrot.lane.b32.xlu0 %v1177, 32
  %v1335 = vpop.permute.xlu0 %1334
  %v1337 = vsel %vm83, %v1332, %v1335
  %v1339 = vsel %vm165, %v1337, 0
  %1341 = vmatprep.subr.mxu0 0.0
  %1342 = vmatpush1.msra.mxu0 0.0
  %1343 = vmatprep.subr.mxu0 0.0
  %1344 = vmatpush1.msra.mxu0 0.0
  %1345 = vmatprep.subr.mxu0 0.0
  %1346 = vmatpush1.msra.mxu0 0.0
  %1347 = vmatprep.subr.mxu0 0.0
  %1348 = vmatpush1.msra.mxu0 0.0
  %1349 = vmatprep.subr.mxu0 0.0
  %1350 = vmatpush1.msra.mxu0 0.0
  %1351 = vmatprep.subr.mxu0 0.0
  %1352 = vmatpush1.msra.mxu0 0.0
  %1353 = vmatprep.subr.mxu0 0.0
  %1354 = vmatpush1.msra.mxu0 0.0
  %1355 = vmatprep.subr.mxu0 0.0
  %1356 = vmatpush1.msra.mxu0 0.0
  %1357 = vmatprep.subr.mxu0 0.0
  %1358 = vmatpush1.msra.mxu0 %v59
  %1359 = vmatprep.subr.mxu0 0.0
  %1360 = vmatpush1.msra.mxu0 %v58
  %1361 = vmatprep.subr.mxu0 0.0
  %1362 = vmatpush1.msra.mxu0 %v57
  %1363 = vmatprep.subr.mxu0 0.0
  %1364 = vmatpush1.msra.mxu0 %v56
  %1365 = vmatprep.subr.mxu0 0.0
  %1366 = vmatpush1.msra.mxu0 %v55
  %1367 = vmatprep.subr.mxu0 0.0
  %1368 = vmatpush1.msra.mxu0 %v54
  %1369 = vmatprep.subr.mxu0 0.0
  %1370 = vmatpush1.msra.mxu0 %v53
  %1371 = vmatprep.subr.mxu0 0.0
  %1372 = vmatpush1.msra.mxu0 %v52
  %1373 = vmatprep.subr.mxu0 0.0
  %1374 = vmatpush2.msra.mxu0 0.0
  %1375 = vmatprep.subr.mxu0 0.0
  %1376 = vmatpush2.msra.mxu0 0.0
  %1377 = vmatprep.subr.mxu0 0.0
  %1378 = vmatpush2.msra.mxu0 0.0
  %1379 = vmatprep.subr.mxu0 0.0
  %1380 = vmatpush2.msra.mxu0 0.0
  %1381 = vmatprep.subr.mxu0 0.0
  %1382 = vmatpush2.msra.mxu0 0.0
  %1383 = vmatprep.subr.mxu0 0.0
  %1384 = vmatpush2.msra.mxu0 0.0
  %1385 = vmatprep.subr.mxu0 0.0
  %1386 = vmatpush2.msra.mxu0 0.0
  %1387 = vmatprep.subr.mxu0 0.0
  %1388 = vmatpush2.msra.mxu0 0.0
  %1389 = vmatprep.subr.mxu0 0.0
  %1390 = vmatpush2.msra.mxu0 0.0
  %1391 = vmatprep.subr.mxu0 0.0
  %1392 = vmatpush2.msra.mxu0 0.0
  %1393 = vmatprep.subr.mxu0 0.0
  %1394 = vmatpush2.msra.mxu0 0.0
  %1395 = vmatprep.subr.mxu0 0.0
  %1396 = vmatpush2.msra.mxu0 0.0
  %1397 = vmatprep.subr.mxu0 0.0
  %1398 = vmatpush2.msra.mxu0 0.0
  %1399 = vmatprep.subr.mxu0 0.0
  %1400 = vmatpush2.msra.mxu0 0.0
  %1401 = vmatprep.subr.mxu0 0.0
  %1402 = vmatpush2.msra.mxu0 0.0
  %1403 = vmatprep.subr.mxu0 0.0
  %1404 = vmatpush2.msra.mxu0 0.0
  %1405 = vmatprep.mubr.f32.mxu0 0.0
  %1406 = vmatmul.mubr.f32.gmra.mxu0 %v1339
  %v1407 = vpop.f32.mrf.mxu0
  %v1408 = vadd.f32 %v163, %v1407
  %v1409 = vpop.f32.mrf.mxu0
  %1410 = vdwg.mxu0
  %v1411 = vtanh.pop %v1408
  %1413 = vrot.lane.b32.xlu0 %v1256, 32
  %v1414 = vpop.permute.xlu0 %1413
  %v1416 = vsel %vm83, %v1411, %v1414
  %v1418 = vsel %vm165, %v1416, 0
  %1420 = vmatprep.subr.mxu0 0.0
  %1421 = vmatpush1.msra.mxu0 0.0
  %1422 = vmatprep.subr.mxu0 0.0
  %1423 = vmatpush1.msra.mxu0 0.0
  %1424 = vmatprep.subr.mxu0 0.0
  %1425 = vmatpush1.msra.mxu0 0.0
  %1426 = vmatprep.subr.mxu0 0.0
  %1427 = vmatpush1.msra.mxu0 0.0
  %1428 = vmatprep.subr.mxu0 0.0
  %1429 = vmatpush1.msra.mxu0 0.0
  %1430 = vmatprep.subr.mxu0 0.0
  %1431 = vmatpush1.msra.mxu0 0.0
  %1432 = vmatprep.subr.mxu0 0.0
  %1433 = vmatpush1.msra.mxu0 0.0
  %1434 = vmatprep.subr.mxu0 0.0
  %1435 = vmatpush1.msra.mxu0 0.0
  %1436 = vmatprep.subr.mxu0 0.0
  %1437 = vmatpush1.msra.mxu0 %v67
  %1438 = vmatprep.subr.mxu0 0.0
  %1439 = vmatpush1.msra.mxu0 %v66
  %1440 = vmatprep.subr.mxu0 0.0
  %1441 = vmatpush1.msra.mxu0 %v65
  %1442 = vmatprep.subr.mxu0 0.0
  %1443 = vmatpush1.msra.mxu0 %v64
  %1444 = vmatprep.subr.mxu0 0.0
  %1445 = vmatpush1.msra.mxu0 %v63
  %1446 = vmatprep.subr.mxu0 0.0
  %1447 = vmatpush1.msra.mxu0 %v62
  %1448 = vmatprep.subr.mxu0 0.0
  %1449 = vmatpush1.msra.mxu0 %v61
  %1450 = vmatprep.subr.mxu0 0.0
  %1451 = vmatpush1.msra.mxu0 %v60
  %1452 = vmatprep.subr.mxu0 0.0
  %1453 = vmatpush2.msra.mxu0 0.0
  %1454 = vmatprep.subr.mxu0 0.0
  %1455 = vmatpush2.msra.mxu0 0.0
  %1456 = vmatprep.subr.mxu0 0.0
  %1457 = vmatpush2.msra.mxu0 0.0
  %1458 = vmatprep.subr.mxu0 0.0
  %1459 = vmatpush2.msra.mxu0 0.0
  %1460 = vmatprep.subr.mxu0 0.0
  %1461 = vmatpush2.msra.mxu0 0.0
  %1462 = vmatprep.subr.mxu0 0.0
  %1463 = vmatpush2.msra.mxu0 0.0
  %1464 = vmatprep.subr.mxu0 0.0
  %1465 = vmatpush2.msra.mxu0 0.0
  %1466 = vmatprep.subr.mxu0 0.0
  %1467 = vmatpush2.msra.mxu0 0.0
  %1468 = vmatprep.subr.mxu0 0.0
  %1469 = vmatpush2.msra.mxu0 0.0
  %1470 = vmatprep.subr.mxu0 0.0
  %1471 = vmatpush2.msra.mxu0 0.0
  %1472 = vmatprep.subr.mxu0 0.0
  %1473 = vmatpush2.msra.mxu0 0.0
  %1474 = vmatprep.subr.mxu0 0.0
  %1475 = vmatpush2.msra.mxu0 0.0
  %1476 = vmatprep.subr.mxu0 0.0
  %1477 = vmatpush2.msra.mxu0 0.0
  %1478 = vmatprep.subr.mxu0 0.0
  %1479 = vmatpush2.msra.mxu0 0.0
  %1480 = vmatprep.subr.mxu0 0.0
  %1481 = vmatpush2.msra.mxu0 0.0
  %1482 = vmatprep.subr.mxu0 0.0
  %1483 = vmatpush2.msra.mxu0 0.0
  %1484 = vmatprep.mubr.f32.mxu0 0.0
  %1485 = vmatmul.mubr.f32.gmra.mxu0 %v1418
  %v1486 = vpop.f32.mrf.mxu0
  %v1487 = vadd.f32 %v245, %v1486
  %v1488 = vpop.f32.mrf.mxu0
  %1489 = vdwg.mxu0
  %v1490 = vtanh.pop %v1487
  %s1491 = scalar_lea.vmem %s0, 48
  %v1492 = vld [vmem:[%s1491] sm:$0xff]
  %v1494 = vsel %vm83, %v1332, 0
  %1496 = vmatprep.subr.mxu0 0.0
  %1497 = vmatpush1.msra.mxu0 %v47
  %1498 = vmatprep.subr.mxu0 0.0
  %1499 = vmatpush1.msra.mxu0 %v46
  %1500 = vmatprep.subr.mxu0 0.0
  %1501 = vmatpush1.msra.mxu0 %v45
  %1502 = vmatprep.subr.mxu0 0.0
  %1503 = vmatpush1.msra.mxu0 %v44
  %1504 = vmatprep.subr.mxu0 0.0
  %1505 = vmatpush1.msra.mxu0 %v43
  %1506 = vmatprep.subr.mxu0 0.0
  %1507 = vmatpush1.msra.mxu0 %v42
  %1508 = vmatprep.subr.mxu0 0.0
  %1509 = vmatpush1.msra.mxu0 %v41
  %1510 = vmatprep.subr.mxu0 0.0
  %1511 = vmatpush1.msra.mxu0 %v40
  %1512 = vmatprep.subr.mxu0 0.0
  %1513 = vmatpush1.msra.mxu0 %v39
  %1514 = vmatprep.subr.mxu0 0.0
  %1515 = vmatpush1.msra.mxu0 %v38
  %1516 = vmatprep.subr.mxu0 0.0
  %1517 = vmatpush1.msra.mxu0 %v37
  %1518 = vmatprep.subr.mxu0 0.0
  %1519 = vmatpush1.msra.mxu0 %v36
  %1520 = vmatprep.subr.mxu0 0.0
  %1521 = vmatpush1.msra.mxu0 %v35
  %1522 = vmatprep.subr.mxu0 0.0
  %1523 = vmatpush1.msra.mxu0 %v34
  %1524 = vmatprep.subr.mxu0 0.0
  %1525 = vmatpush1.msra.mxu0 %v33
  %1526 = vmatprep.subr.mxu0 0.0
  %1527 = vmatpush1.msra.mxu0 %v32
  %1528 = vmatprep.subr.mxu0 0.0
  %1529 = vmatpush2.msra.mxu0 0.0
  %1530 = vmatprep.subr.mxu0 0.0
  %1531 = vmatpush2.msra.mxu0 0.0
  %1532 = vmatprep.subr.mxu0 0.0
  %1533 = vmatpush2.msra.mxu0 0.0
  %1534 = vmatprep.subr.mxu0 0.0
  %1535 = vmatpush2.msra.mxu0 0.0
  %1536 = vmatprep.subr.mxu0 0.0
  %1537 = vmatpush2.msra.mxu0 0.0
  %1538 = vmatprep.subr.mxu0 0.0
  %1539 = vmatpush2.msra.mxu0 0.0
  %1540 = vmatprep.subr.mxu0 0.0
  %1541 = vmatpush2.msra.mxu0 0.0
  %1542 = vmatprep.subr.mxu0 0.0
  %1543 = vmatpush2.msra.mxu0 0.0
  %1544 = vmatprep.subr.mxu0 0.0
  %1545 = vmatpush2.msra.mxu0 0.0
  %1546 = vmatprep.subr.mxu0 0.0
  %1547 = vmatpush2.msra.mxu0 0.0
  %1548 = vmatprep.subr.mxu0 0.0
  %1549 = vmatpush2.msra.mxu0 0.0
  %1550 = vmatprep.subr.mxu0 0.0
  %1551 = vmatpush2.msra.mxu0 0.0
  %1552 = vmatprep.subr.mxu0 0.0
  %1553 = vmatpush2.msra.mxu0 %v51
  %1554 = vmatprep.subr.mxu0 0.0
  %1555 = vmatpush2.msra.mxu0 %v50
  %1556 = vmatprep.subr.mxu0 0.0
  %1557 = vmatpush2.msra.mxu0 %v49
  %1558 = vmatprep.subr.mxu0 0.0
  %1559 = vmatpush2.msra.mxu0 %v48
  %1560 = vmatprep.mubr.f32.mxu0 %v1494
  %1561 = vmatmul.mubr.f32.gmra.mxu0 %v1492
  %v1562 = vpop.f32.mrf.mxu0
  %v1563 = vadd.f32 %v81, %v1562
  %v1564 = vpop.f32.mrf.mxu0
  %1565 = vdwg.mxu0
  %v1566 = vtanh.pop %v1563
  %1568 = vrot.lane.b32.xlu0 %v1411, 32
  %v1569 = vpop.permute.xlu0 %1568
  %v1571 = vsel %vm83, %v1566, %v1569
  %v1573 = vsel %vm165, %v1571, 0
  %1575 = vmatprep.subr.mxu0 0.0
  %1576 = vmatpush1.msra.mxu0 0.0
  %1577 = vmatprep.subr.mxu0 0.0
  %1578 = vmatpush1.msra.mxu0 0.0
  %1579 = vmatprep.subr.mxu0 0.0
  %1580 = vmatpush1.msra.mxu0 0.0
  %1581 = vmatprep.subr.mxu0 0.0
  %1582 = vmatpush1.msra.mxu0 0.0
  %1583 = vmatprep.subr.mxu0 0.0
  %1584 = vmatpush1.msra.mxu0 0.0
  %1585 = vmatprep.subr.mxu0 0.0
  %1586 = vmatpush1.msra.mxu0 0.0
  %1587 = vmatprep.subr.mxu0 0.0
  %1588 = vmatpush1.msra.mxu0 0.0
  %1589 = vmatprep.subr.mxu0 0.0
  %1590 = vmatpush1.msra.mxu0 0.0
  %1591 = vmatprep.subr.mxu0 0.0
  %1592 = vmatpush1.msra.mxu0 %v59
  %1593 = vmatprep.subr.mxu0 0.0
  %1594 = vmatpush1.msra.mxu0 %v58
  %1595 = vmatprep.subr.mxu0 0.0
  %1596 = vmatpush1.msra.mxu0 %v57
  %1597 = vmatprep.subr.mxu0 0.0
  %1598 = vmatpush1.msra.mxu0 %v56
  %1599 = vmatprep.subr.mxu0 0.0
  %1600 = vmatpush1.msra.mxu0 %v55
  %1601 = vmatprep.subr.mxu0 0.0
  %1602 = vmatpush1.msra.mxu0 %v54
  %1603 = vmatprep.subr.mxu0 0.0
  %1604 = vmatpush1.msra.mxu0 %v53
  %1605 = vmatprep.subr.mxu0 0.0
  %1606 = vmatpush1.msra.mxu0 %v52
  %1607 = vmatprep.subr.mxu0 0.0
  %1608 = vmatpush2.msra.mxu0 0.0
  %1609 = vmatprep.subr.mxu0 0.0
  %1610 = vmatpush2.msra.mxu0 0.0
  %1611 = vmatprep.subr.mxu0 0.0
  %1612 = vmatpush2.msra.mxu0 0.0
  %1613 = vmatprep.subr.mxu0 0.0
  %1614 = vmatpush2.msra.mxu0 0.0
  %1615 = vmatprep.subr.mxu0 0.0
  %1616 = vmatpush2.msra.mxu0 0.0
  %1617 = vmatprep.subr.mxu0 0.0
  %1618 = vmatpush2.msra.mxu0 0.0
  %1619 = vmatprep.subr.mxu0 0.0
  %1620 = vmatpush2.msra.mxu0 0.0
  %1621 = vmatprep.subr.mxu0 0.0
  %1622 = vmatpush2.msra.mxu0 0.0
  %1623 = vmatprep.subr.mxu0 0.0
  %1624 = vmatpush2.msra.mxu0 0.0
  %1625 = vmatprep.subr.mxu0 0.0
  %1626 = vmatpush2.msra.mxu0 0.0
  %1627 = vmatprep.subr.mxu0 0.0
  %1628 = vmatpush2.msra.mxu0 0.0
  %1629 = vmatprep.subr.mxu0 0.0
  %1630 = vmatpush2.msra.mxu0 0.0
  %1631 = vmatprep.subr.mxu0 0.0
  %1632 = vmatpush2.msra.mxu0 0.0
  %1633 = vmatprep.subr.mxu0 0.0
  %1634 = vmatpush2.msra.mxu0 0.0
  %1635 = vmatprep.subr.mxu0 0.0
  %1636 = vmatpush2.msra.mxu0 0.0
  %1637 = vmatprep.subr.mxu0 0.0
  %1638 = vmatpush2.msra.mxu0 0.0
  %1639 = vmatprep.mubr.f32.mxu0 0.0
  %1640 = vmatmul.mubr.f32.gmra.mxu0 %v1573
  %v1641 = vpop.f32.mrf.mxu0
  %v1642 = vadd.f32 %v163, %v1641
  %v1643 = vpop.f32.mrf.mxu0
  %1644 = vdwg.mxu0
  %v1645 = vtanh.pop %v1642
  %1647 = vrot.lane.b32.xlu0 %v1490, 32
  %v1648 = vpop.permute.xlu0 %1647
  %v1650 = vsel %vm83, %v1645, %v1648
  %v1652 = vsel %vm165, %v1650, 0
  %1654 = vmatprep.subr.mxu0 0.0
  %1655 = vmatpush1.msra.mxu0 0.0
  %1656 = vmatprep.subr.mxu0 0.0
  %1657 = vmatpush1.msra.mxu0 0.0
  %1658 = vmatprep.subr.mxu0 0.0
  %1659 = vmatpush1.msra.mxu0 0.0
  %1660 = vmatprep.subr.mxu0 0.0
  %1661 = vmatpush1.msra.mxu0 0.0
  %1662 = vmatprep.subr.mxu0 0.0
  %1663 = vmatpush1.msra.mxu0 0.0
  %1664 = vmatprep.subr.mxu0 0.0
  %1665 = vmatpush1.msra.mxu0 0.0
  %1666 = vmatprep.subr.mxu0 0.0
  %1667 = vmatpush1.msra.mxu0 0.0
  %1668 = vmatprep.subr.mxu0 0.0
  %1669 = vmatpush1.msra.mxu0 0.0
  %1670 = vmatprep.subr.mxu0 0.0
  %1671 = vmatpush1.msra.mxu0 %v67
  %1672 = vmatprep.subr.mxu0 0.0
  %1673 = vmatpush1.msra.mxu0 %v66
  %1674 = vmatprep.subr.mxu0 0.0
  %1675 = vmatpush1.msra.mxu0 %v65
  %1676 = vmatprep.subr.mxu0 0.0
  %1677 = vmatpush1.msra.mxu0 %v64
  %1678 = vmatprep.subr.mxu0 0.0
  %1679 = vmatpush1.msra.mxu0 %v63
  %1680 = vmatprep.subr.mxu0 0.0
  %1681 = vmatpush1.msra.mxu0 %v62
  %1682 = vmatprep.subr.mxu0 0.0
  %1683 = vmatpush1.msra.mxu0 %v61
  %1684 = vmatprep.subr.mxu0 0.0
  %1685 = vmatpush1.msra.mxu0 %v60
  %1686 = vmatprep.subr.mxu0 0.0
  %1687 = vmatpush2.msra.mxu0 0.0
  %1688 = vmatprep.subr.mxu0 0.0
  %1689 = vmatpush2.msra.mxu0 0.0
  %1690 = vmatprep.subr.mxu0 0.0
  %1691 = vmatpush2.msra.mxu0 0.0
  %1692 = vmatprep.subr.mxu0 0.0
  %1693 = vmatpush2.msra.mxu0 0.0
  %1694 = vmatprep.subr.mxu0 0.0
  %1695 = vmatpush2.msra.mxu0 0.0
  %1696 = vmatprep.subr.mxu0 0.0
  %1697 = vmatpush2.msra.mxu0 0.0
  %1698 = vmatprep.subr.mxu0 0.0
  %1699 = vmatpush2.msra.mxu0 0.0
  %1700 = vmatprep.subr.mxu0 0.0
  %1701 = vmatpush2.msra.mxu0 0.0
  %1702 = vmatprep.subr.mxu0 0.0
  %1703 = vmatpush2.msra.mxu0 0.0
  %1704 = vmatprep.subr.mxu0 0.0
  %1705 = vmatpush2.msra.mxu0 0.0
  %1706 = vmatprep.subr.mxu0 0.0
  %1707 = vmatpush2.msra.mxu0 0.0
  %1708 = vmatprep.subr.mxu0 0.0
  %1709 = vmatpush2.msra.mxu0 0.0
  %1710 = vmatprep.subr.mxu0 0.0
  %1711 = vmatpush2.msra.mxu0 0.0
  %1712 = vmatprep.subr.mxu0 0.0
  %1713 = vmatpush2.msra.mxu0 0.0
  %1714 = vmatprep.subr.mxu0 0.0
  %1715 = vmatpush2.msra.mxu0 0.0
  %1716 = vmatprep.subr.mxu0 0.0
  %1717 = vmatpush2.msra.mxu0 0.0
  %1718 = vmatprep.mubr.f32.mxu0 0.0
  %1719 = vmatmul.mubr.f32.gmra.mxu0 %v1652
  %v1720 = vpop.f32.mrf.mxu0
  %v1721 = vadd.f32 %v245, %v1720
  %v1722 = vpop.f32.mrf.mxu0
  %1723 = vdwg.mxu0
  %v1724 = vtanh.pop %v1721
  %s1725 = scalar_lea.vmem %s0, 56
  %v1726 = vld [vmem:[%s1725] sm:$0xff]
  %v1728 = vsel %vm83, %v1566, 0
  %1730 = vmatprep.subr.mxu0 0.0
  %1731 = vmatpush1.msra.mxu0 %v47
  %1732 = vmatprep.subr.mxu0 0.0
  %1733 = vmatpush1.msra.mxu0 %v46
  %1734 = vmatprep.subr.mxu0 0.0
  %1735 = vmatpush1.msra.mxu0 %v45
  %1736 = vmatprep.subr.mxu0 0.0
  %1737 = vmatpush1.msra.mxu0 %v44
  %1738 = vmatprep.subr.mxu0 0.0
  %1739 = vmatpush1.msra.mxu0 %v43
  %1740 = vmatprep.subr.mxu0 0.0
  %1741 = vmatpush1.msra.mxu0 %v42
  %1742 = vmatprep.subr.mxu0 0.0
  %1743 = vmatpush1.msra.mxu0 %v41
  %1744 = vmatprep.subr.mxu0 0.0
  %1745 = vmatpush1.msra.mxu0 %v40
  %1746 = vmatprep.subr.mxu0 0.0
  %1747 = vmatpush1.msra.mxu0 %v39
  %1748 = vmatprep.subr.mxu0 0.0
  %1749 = vmatpush1.msra.mxu0 %v38
  %1750 = vmatprep.subr.mxu0 0.0
  %1751 = vmatpush1.msra.mxu0 %v37
  %1752 = vmatprep.subr.mxu0 0.0
  %1753 = vmatpush1.msra.mxu0 %v36
  %1754 = vmatprep.subr.mxu0 0.0
  %1755 = vmatpush1.msra.mxu0 %v35
  %1756 = vmatprep.subr.mxu0 0.0
  %1757 = vmatpush1.msra.mxu0 %v34
  %1758 = vmatprep.subr.mxu0 0.0
  %1759 = vmatpush1.msra.mxu0 %v33
  %1760 = vmatprep.subr.mxu0 0.0
  %1761 = vmatpush1.msra.mxu0 %v32
  %1762 = vmatprep.subr.mxu0 0.0
  %1763 = vmatpush2.msra.mxu0 0.0
  %1764 = vmatprep.subr.mxu0 0.0
  %1765 = vmatpush2.msra.mxu0 0.0
  %1766 = vmatprep.subr.mxu0 0.0
  %1767 = vmatpush2.msra.mxu0 0.0
  %1768 = vmatprep.subr.mxu0 0.0
  %1769 = vmatpush2.msra.mxu0 0.0
  %1770 = vmatprep.subr.mxu0 0.0
  %1771 = vmatpush2.msra.mxu0 0.0
  %1772 = vmatprep.subr.mxu0 0.0
  %1773 = vmatpush2.msra.mxu0 0.0
  %1774 = vmatprep.subr.mxu0 0.0
  %1775 = vmatpush2.msra.mxu0 0.0
  %1776 = vmatprep.subr.mxu0 0.0
  %1777 = vmatpush2.msra.mxu0 0.0
  %1778 = vmatprep.subr.mxu0 0.0
  %1779 = vmatpush2.msra.mxu0 0.0
  %1780 = vmatprep.subr.mxu0 0.0
  %1781 = vmatpush2.msra.mxu0 0.0
  %1782 = vmatprep.subr.mxu0 0.0
  %1783 = vmatpush2.msra.mxu0 0.0
  %1784 = vmatprep.subr.mxu0 0.0
  %1785 = vmatpush2.msra.mxu0 0.0
  %1786 = vmatprep.subr.mxu0 0.0
  %1787 = vmatpush2.msra.mxu0 %v51
  %1788 = vmatprep.subr.mxu0 0.0
  %1789 = vmatpush2.msra.mxu0 %v50
  %1790 = vmatprep.subr.mxu0 0.0
  %1791 = vmatpush2.msra.mxu0 %v49
  %1792 = vmatprep.subr.mxu0 0.0
  %1793 = vmatpush2.msra.mxu0 %v48
  %1794 = vmatprep.mubr.f32.mxu0 %v1728
  %1795 = vmatmul.mubr.f32.gmra.mxu0 %v1726
  %v1796 = vpop.f32.mrf.mxu0
  %v1797 = vadd.f32 %v81, %v1796
  %v1798 = vpop.f32.mrf.mxu0
  %1799 = vdwg.mxu0
  %v1800 = vtanh.pop %v1797
  %1802 = vrot.lane.b32.xlu0 %v1645, 32
  %v1803 = vpop.permute.xlu0 %1802
  %v1805 = vsel %vm83, %v1800, %v1803
  %v1807 = vsel %vm165, %v1805, 0
  %1809 = vmatprep.subr.mxu0 0.0
  %1810 = vmatpush1.msra.mxu0 0.0
  %1811 = vmatprep.subr.mxu0 0.0
  %1812 = vmatpush1.msra.mxu0 0.0
  %1813 = vmatprep.subr.mxu0 0.0
  %1814 = vmatpush1.msra.mxu0 0.0
  %1815 = vmatprep.subr.mxu0 0.0
  %1816 = vmatpush1.msra.mxu0 0.0
  %1817 = vmatprep.subr.mxu0 0.0
  %1818 = vmatpush1.msra.mxu0 0.0
  %1819 = vmatprep.subr.mxu0 0.0
  %1820 = vmatpush1.msra.mxu0 0.0
  %1821 = vmatprep.subr.mxu0 0.0
  %1822 = vmatpush1.msra.mxu0 0.0
  %1823 = vmatprep.subr.mxu0 0.0
  %1824 = vmatpush1.msra.mxu0 0.0
  %1825 = vmatprep.subr.mxu0 0.0
  %1826 = vmatpush1.msra.mxu0 %v59
  %1827 = vmatprep.subr.mxu0 0.0
  %1828 = vmatpush1.msra.mxu0 %v58
  %1829 = vmatprep.subr.mxu0 0.0
  %1830 = vmatpush1.msra.mxu0 %v57
  %1831 = vmatprep.subr.mxu0 0.0
  %1832 = vmatpush1.msra.mxu0 %v56
  %1833 = vmatprep.subr.mxu0 0.0
  %1834 = vmatpush1.msra.mxu0 %v55
  %1835 = vmatprep.subr.mxu0 0.0
  %1836 = vmatpush1.msra.mxu0 %v54
  %1837 = vmatprep.subr.mxu0 0.0
  %1838 = vmatpush1.msra.mxu0 %v53
  %1839 = vmatprep.subr.mxu0 0.0
  %1840 = vmatpush1.msra.mxu0 %v52
  %1841 = vmatprep.subr.mxu0 0.0
  %1842 = vmatpush2.msra.mxu0 0.0
  %1843 = vmatprep.subr.mxu0 0.0
  %1844 = vmatpush2.msra.mxu0 0.0
  %1845 = vmatprep.subr.mxu0 0.0
  %1846 = vmatpush2.msra.mxu0 0.0
  %1847 = vmatprep.subr.mxu0 0.0
  %1848 = vmatpush2.msra.mxu0 0.0
  %1849 = vmatprep.subr.mxu0 0.0
  %1850 = vmatpush2.msra.mxu0 0.0
  %1851 = vmatprep.subr.mxu0 0.0
  %1852 = vmatpush2.msra.mxu0 0.0
  %1853 = vmatprep.subr.mxu0 0.0
  %1854 = vmatpush2.msra.mxu0 0.0
  %1855 = vmatprep.subr.mxu0 0.0
  %1856 = vmatpush2.msra.mxu0 0.0
  %1857 = vmatprep.subr.mxu0 0.0
  %1858 = vmatpush2.msra.mxu0 0.0
  %1859 = vmatprep.subr.mxu0 0.0
  %1860 = vmatpush2.msra.mxu0 0.0
  %1861 = vmatprep.subr.mxu0 0.0
  %1862 = vmatpush2.msra.mxu0 0.0
  %1863 = vmatprep.subr.mxu0 0.0
  %1864 = vmatpush2.msra.mxu0 0.0
  %1865 = vmatprep.subr.mxu0 0.0
  %1866 = vmatpush2.msra.mxu0 0.0
  %1867 = vmatprep.subr.mxu0 0.0
  %1868 = vmatpush2.msra.mxu0 0.0
  %1869 = vmatprep.subr.mxu0 0.0
  %1870 = vmatpush2.msra.mxu0 0.0
  %1871 = vmatprep.subr.mxu0 0.0
  %1872 = vmatpush2.msra.mxu0 0.0
  %1873 = vmatprep.mubr.f32.mxu0 0.0
  %1874 = vmatmul.mubr.f32.gmra.mxu0 %v1807
  %v1875 = vpop.f32.mrf.mxu0
  %v1876 = vadd.f32 %v163, %v1875
  %v1877 = vpop.f32.mrf.mxu0
  %1878 = vdwg.mxu0
  %v1879 = vtanh.pop %v1876
  %1881 = vrot.lane.b32.xlu0 %v1724, 32
  %v1882 = vpop.permute.xlu0 %1881
  %v1884 = vsel %vm83, %v1879, %v1882
  %v1886 = vsel %vm165, %v1884, 0
  %1888 = vmatprep.subr.mxu0 0.0
  %1889 = vmatpush1.msra.mxu0 0.0
  %1890 = vmatprep.subr.mxu0 0.0
  %1891 = vmatpush1.msra.mxu0 0.0
  %1892 = vmatprep.subr.mxu0 0.0
  %1893 = vmatpush1.msra.mxu0 0.0
  %1894 = vmatprep.subr.mxu0 0.0
  %1895 = vmatpush1.msra.mxu0 0.0
  %1896 = vmatprep.subr.mxu0 0.0
  %1897 = vmatpush1.msra.mxu0 0.0
  %1898 = vmatprep.subr.mxu0 0.0
  %1899 = vmatpush1.msra.mxu0 0.0
  %1900 = vmatprep.subr.mxu0 0.0
  %1901 = vmatpush1.msra.mxu0 0.0
  %1902 = vmatprep.subr.mxu0 0.0
  %1903 = vmatpush1.msra.mxu0 0.0
  %1904 = vmatprep.subr.mxu0 0.0
  %1905 = vmatpush1.msra.mxu0 %v67
  %1906 = vmatprep.subr.mxu0 0.0
  %1907 = vmatpush1.msra.mxu0 %v66
  %1908 = vmatprep.subr.mxu0 0.0
  %1909 = vmatpush1.msra.mxu0 %v65
  %1910 = vmatprep.subr.mxu0 0.0
  %1911 = vmatpush1.msra.mxu0 %v64
  %1912 = vmatprep.subr.mxu0 0.0
  %1913 = vmatpush1.msra.mxu0 %v63
  %1914 = vmatprep.subr.mxu0 0.0
  %1915 = vmatpush1.msra.mxu0 %v62
  %1916 = vmatprep.subr.mxu0 0.0
  %1917 = vmatpush1.msra.mxu0 %v61
  %1918 = vmatprep.subr.mxu0 0.0
  %1919 = vmatpush1.msra.mxu0 %v60
  %1920 = vmatprep.subr.mxu0 0.0
  %1921 = vmatpush2.msra.mxu0 0.0
  %1922 = vmatprep.subr.mxu0 0.0
  %1923 = vmatpush2.msra.mxu0 0.0
  %1924 = vmatprep.subr.mxu0 0.0
  %1925 = vmatpush2.msra.mxu0 0.0
  %1926 = vmatprep.subr.mxu0 0.0
  %1927 = vmatpush2.msra.mxu0 0.0
  %1928 = vmatprep.subr.mxu0 0.0
  %1929 = vmatpush2.msra.mxu0 0.0
  %1930 = vmatprep.subr.mxu0 0.0
  %1931 = vmatpush2.msra.mxu0 0.0
  %1932 = vmatprep.subr.mxu0 0.0
  %1933 = vmatpush2.msra.mxu0 0.0
  %1934 = vmatprep.subr.mxu0 0.0
  %1935 = vmatpush2.msra.mxu0 0.0
  %1936 = vmatprep.subr.mxu0 0.0
  %1937 = vmatpush2.msra.mxu0 0.0
  %1938 = vmatprep.subr.mxu0 0.0
  %1939 = vmatpush2.msra.mxu0 0.0
  %1940 = vmatprep.subr.mxu0 0.0
  %1941 = vmatpush2.msra.mxu0 0.0
  %1942 = vmatprep.subr.mxu0 0.0
  %1943 = vmatpush2.msra.mxu0 0.0
  %1944 = vmatprep.subr.mxu0 0.0
  %1945 = vmatpush2.msra.mxu0 0.0
  %1946 = vmatprep.subr.mxu0 0.0
  %1947 = vmatpush2.msra.mxu0 0.0
  %1948 = vmatprep.subr.mxu0 0.0
  %1949 = vmatpush2.msra.mxu0 0.0
  %1950 = vmatprep.subr.mxu0 0.0
  %1951 = vmatpush2.msra.mxu0 0.0
  %1952 = vmatprep.mubr.f32.mxu0 0.0
  %1953 = vmatmul.mubr.f32.gmra.mxu0 %v1886
  %v1954 = vpop.f32.mrf.mxu0
  %v1955 = vadd.f32 %v245, %v1954
  %v1956 = vpop.f32.mrf.mxu0
  %1957 = vdwg.mxu0
  %v1958 = vtanh.pop %v1955
  %v1960 = vlaneseq
  %v1961 = vshrl.u32 %v1960, 7
  %v1962 = vsub.s32 0, %v1961
  %v1963 = vrot.slane %v75, %v1962
  %v1966 = vsel %vm83, %v1958, 0
  %1968 = vmatprep.subr.mxu0 0.0
  %1969 = vmatpush1.msra.mxu0 0.0
  %1970 = vmatprep.subr.mxu0 0.0
  %1971 = vmatpush1.msra.mxu0 0.0
  %1972 = vmatprep.subr.mxu0 0.0
  %1973 = vmatpush1.msra.mxu0 0.0
  %1974 = vmatprep.subr.mxu0 0.0
  %1975 = vmatpush1.msra.mxu0 0.0
  %1976 = vmatprep.subr.mxu0 0.0
  %1977 = vmatpush1.msra.mxu0 0.0
  %1978 = vmatprep.subr.mxu0 0.0
  %1979 = vmatpush1.msra.mxu0 0.0
  %1980 = vmatprep.subr.mxu0 0.0
  %1981 = vmatpush1.msra.mxu0 0.0
  %1982 = vmatprep.subr.mxu0 0.0
  %1983 = vmatpush1.msra.mxu0 0.0
  %1984 = vmatprep.subr.mxu0 0.0
  %1985 = vmatpush1.msra.mxu0 0.0
  %1986 = vmatprep.subr.mxu0 0.0
  %1987 = vmatpush1.msra.mxu0 0.0
  %1988 = vmatprep.subr.mxu0 0.0
  %1989 = vmatpush1.msra.mxu0 0.0
  %1990 = vmatprep.subr.mxu0 0.0
  %1991 = vmatpush1.msra.mxu0 0.0
  %1992 = vmatprep.subr.mxu0 0.0
  %1993 = vmatpush1.msra.mxu0 %v74
  %1994 = vmatprep.subr.mxu0 0.0
  %1995 = vmatpush1.msra.mxu0 %v73
  %1996 = vmatprep.subr.mxu0 0.0
  %1997 = vmatpush1.msra.mxu0 %v72
  %1998 = vmatprep.subr.mxu0 0.0
  %1999 = vmatpush1.msra.mxu0 %v71
  %2000 = vmatprep.subr.mxu0 0.0
  %2001 = vmatpush2.msra.mxu0 0.0
  %2002 = vmatprep.subr.mxu0 0.0
  %2003 = vmatpush2.msra.mxu0 0.0
  %2004 = vmatprep.subr.mxu0 0.0
  %2005 = vmatpush2.msra.mxu0 0.0
  %2006 = vmatprep.subr.mxu0 0.0
  %2007 = vmatpush2.msra.mxu0 0.0
  %2008 = vmatprep.subr.mxu0 0.0
  %2009 = vmatpush2.msra.mxu0 0.0
  %2010 = vmatprep.subr.mxu0 0.0
  %2011 = vmatpush2.msra.mxu0 0.0
  %2012 = vmatprep.subr.mxu0 0.0
  %2013 = vmatpush2.msra.mxu0 0.0
  %2014 = vmatprep.subr.mxu0 0.0
  %2015 = vmatpush2.msra.mxu0 0.0
  %2016 = vmatprep.subr.mxu0 0.0
  %2017 = vmatpush2.msra.mxu0 0.0
  %2018 = vmatprep.subr.mxu0 0.0
  %2019 = vmatpush2.msra.mxu0 0.0
  %2020 = vmatprep.subr.mxu0 0.0
  %2021 = vmatpush2.msra.mxu0 0.0
  %2022 = vmatprep.subr.mxu0 0.0
  %2023 = vmatpush2.msra.mxu0 0.0
  %2024 = vmatprep.subr.mxu0 0.0
  %2025 = vmatpush2.msra.mxu0 0.0
  %2026 = vmatprep.subr.mxu0 0.0
  %2027 = vmatpush2.msra.mxu0 0.0
  %2028 = vmatprep.subr.mxu0 0.0
  %2029 = vmatpush2.msra.mxu0 0.0
  %2030 = vmatprep.subr.mxu0 0.0
  %2031 = vmatpush2.msra.mxu0 0.0
  %2032 = vmatprep.mubr.f32.mxu0 0.0
  %2033 = vmatmul.mubr.f32.gmra.mxu0 %v1966
  %v2034 = vpop.f32.mrf.mxu0
  %v2035 = vadd.f32 %v1963, %v2034
  %v2036 = vpop.f32.mrf.mxu0
  %2037 = vdwg.mxu0
  %2038 = vst [vmem:[%s9] sm:$0xff] %v2035
  // Predicated region
  $region38: #{rnn_regressor_forward.1} parent=0 // pred_check
    _
  $region39: #{rnn_regressor_forward.1} parent=0 // pred_check_branch
    %2040 = sbr.rel (0) target = $region41
  $region40: #{rnn_regressor_forward.1} parent=0 // pred_region
    _
  $region41: #{rnn_regressor_forward.1} parent=0 // pred_fallthru
    _
  // Predicated region
  $region42: #{rnn_regressor_forward.1} parent=0 // pred_check
    _
  $region43: #{rnn_regressor_forward.1} parent=0 // pred_check_branch
    %2042 = sbr.rel (0) target = $region45
  $region44: #{rnn_regressor_forward.1} parent=0 // pred_region
    _
  $region45: #{rnn_regressor_forward.1} parent=0 // pred_fallthru
    _

</llo_original>
